<compile_context>
chip_gen: v7x
topology: tpu7x:2x2x1
jax: 0.10.0
libtpu: 0.0.40
codegen_flags: <defaults>
</compile_context>

<pallas_src>
import functools

import jax
import jax.numpy as jnp
from jax.experimental import pallas as pl
from jax.experimental.pallas import tpu as pltpu

KSIZE = 7
PAD = 3


def _round_up(x, m):
    return (x + m - 1) // m * m


def _cbam_kernel(w_ref, b_ref, col_ref, x_ref, o_ref, a_buf, m_buf,
                 *, Nb, C, H, W, Lal, BUF, CH):
    """One (Nb, C, H*W) slab per grid step.

    w_ref   : SMEM (2*49,) f32   Conv2d(2,1,7,7) weights, layout [in_c, kh, kw]
    b_ref   : SMEM (1,)    f32   conv bias
    col_ref : VMEM (1, HW) i32   column index j = o % W for each flat position o
    x_ref   : VMEM (Nb, C, HW)   input slab (native dtype, lane-dense)
    o_ref   : VMEM (Nb, C, HW)   output slab
    a_buf   : VMEM (Nb, BUF) f32 flat zero-padded channel-mean maps
    m_buf   : VMEM (Nb, BUF) f32 flat zero-padded channel-max maps
    """
    HW = H * W
    tail = BUF - (Lal + HW)

    # Re-zero only the halo regions every step (grid axis is "parallel", so a
    # one-time init would be unsafe; the interior is fully overwritten below).
    a_buf[:, pl.ds(0, Lal)] = jnp.zeros((Nb, Lal), jnp.float32)
    m_buf[:, pl.ds(0, Lal)] = jnp.zeros((Nb, Lal), jnp.float32)
    a_buf[:, pl.ds(Lal + HW, tail)] = jnp.zeros((Nb, tail), jnp.float32)
    m_buf[:, pl.ds(Lal + HW, tail)] = jnp.zeros((Nb, tail), jnp.float32)

    # ---- Pass 1 over the slab: fused channel sum + max.  Each chunk of x is
    # ---- loaded from VMEM once and feeds both running reductions.
    rem = C % CH
    for b in range(Nb):
        xb = x_ref.at[b]                               # (C, HW) ref view
        s = jnp.zeros((1, HW), jnp.float32)
        m = jnp.full((1, HW), -jnp.inf, jnp.float32)
        for c0 in range(0, C - rem, CH):
            chunk = xb[pl.ds(c0, CH), :].astype(jnp.float32)
            s = s + jnp.sum(chunk, axis=0, keepdims=True)
            m = jnp.maximum(m, jnp.max(chunk, axis=0, keepdims=True))
        if rem:
            chunk = xb[pl.ds(C - rem, rem), :].astype(jnp.float32)
            s = s + jnp.sum(chunk, axis=0, keepdims=True)
            m = jnp.maximum(m, jnp.max(chunk, axis=0, keepdims=True))
        # 128-lane-aligned interior writes (unmasked when HW % 128 == 0).
        a_buf[pl.ds(b, 1), pl.ds(Lal, HW)] = s * (1.0 / C)   # channel mean
        m_buf[pl.ds(b, 1), pl.ds(Lal, HW)] = m               # channel max

    # ---- 7x7 conv over the two reduced maps, in flat lane space.
    # Tap (ki, kj) for output o = i*W + j reads buffer index
    #   Lal + (i+ki-3)*W + (j+kj-3) = (Lal - 3W - 3 + ki*W + kj) + o,
    # which is a direct static ref slice.  Row overflow lands in the zero
    # halo; column wrap-around is removed by the per-kj validity mask (it
    # depends only on the output column j, identical for every ki).
    col = col_ref[...]                                   # (1, HW) int32
    base = Lal - PAD * W - PAD
    acc = jnp.zeros((Nb, HW), jnp.float32) + b_ref[0]
    for kj in range(KSIZE):
        dj = kj - PAD
        part = jnp.zeros((Nb, HW), jnp.float32)
        for ki in range(KSIZE):
            start = base + ki * W + kj
            a_tap = a_buf[:, pl.ds(start, HW)]           # (Nb, HW) f32
            m_tap = m_buf[:, pl.ds(start, HW)]
            part = part + w_ref[ki * KSIZE + kj] * a_tap
            part = part + w_ref[KSIZE * KSIZE + ki * KSIZE + kj] * m_tap
        if dj == 0:
            acc = acc + part
        else:
            valid = (col + dj >= 0) & (col + dj < W)      # (1, HW) bool
            acc = acc + jnp.where(valid, part, 0.0)

    # Exact sigmoid (tiny map; exp runs on the EUP, divide cost is negligible).
    att = 1.0 / (1.0 + jnp.exp(-acc))                     # (Nb, HW) f32

    # ---- Pass 2 over the slab: scale and store (lane-dense, unmasked vst).
    for b in range(Nb):
        xb = x_ref.at[b]
        ob = o_ref.at[b]
        att_b = att[b:b + 1, :].astype(o_ref.dtype)       # (1, HW)
        for c0 in range(0, C - rem, CH):
            ob[pl.ds(c0, CH), :] = xb[pl.ds(c0, CH), :] * att_b
        if rem:
            ob[pl.ds(C - rem, rem), :] = xb[pl.ds(C - rem, rem), :] * att_b


def _pick_nb(N, slab_bytes, target_bytes=4 << 20):
    """Batch elements per grid step: blocks up to ~4 MB, but keep >= 2 grid
    steps (two v7x TensorCores) whenever N >= 2."""
    best = 1
    for nb in range(1, N + 1):
        if N % nb:
            continue
        if nb * slab_bytes > target_bytes:
            break
        if N >= 2 and N // nb < 2:
            break
        best = nb
    return best


def _vmem_limit_bytes(per_step_bytes):
    """Generation-aware VMEM budget: <= ~75% of physical capacity, at least
    the double-buffered working set, never below 32 MiB."""
    try:
        cap = int(pltpu.get_tpu_info().vmem_capacity_bytes)
    except Exception:
        cap = 64 * 1024 * 1024          # conservative (v7x per-TC VMEM)
    cap75 = (3 * cap) // 4
    need = per_step_bytes + (4 << 20)   # headroom for compiler scratch
    return int(min(max(need, 32 << 20), cap75))


def cbam_forward(x, spatial_w, spatial_b):
    """x: (N, C, H, W); spatial_w: (1, 2, 7, 7); spatial_b: (1,)."""
    N, C, H, W = x.shape
    HW = H * W
    itemsize = jnp.dtype(x.dtype).itemsize

    Lal = _round_up(PAD * W + PAD, 128)              # 128-aligned map offset
    BUF = _round_up(Lal + HW + PAD * W + PAD, 128)   # flat padded buffer length
    CH = 8 * max(1, 4 // itemsize)                   # sublane chunk for slab passes
    Nb = _pick_nb(N, C * HW * itemsize)

    x_flat = x.reshape(N, C, HW)                     # lane-dense layout (free reshape)
    w_flat = spatial_w.reshape(-1).astype(jnp.float32)        # (98,), [in_c, kh, kw]
    bias = spatial_b.reshape(-1).astype(jnp.float32)          # (1,)
    col_ids = (jnp.arange(HW, dtype=jnp.int32) % W).reshape(1, HW)

    kernel = functools.partial(_cbam_kernel, Nb=Nb, C=C, H=H, W=W,
                               Lal=Lal, BUF=BUF, CH=CH)

    block_bytes = Nb * C * HW * itemsize
    scratch_bytes = 2 * Nb * BUF * 4
    # in + out blocks, double-buffered, plus scratch / column ids / weights.
    per_step = 2 * 2 * block_bytes + scratch_bytes + 2 * HW * 4 + 1024

    cost = pl.CostEstimate(
        flops=int(N * HW * (3 * C + 4 * KSIZE * KSIZE + 8)),
        transcendentals=int(N * HW),
        bytes_accessed=int(2 * N * C * HW * itemsize + HW * 4 + 99 * 4),
    )

    # TODO(synk): for slabs whose double-buffered footprint exceeds the v7x
    # VMEM budget, add C/H tiling (two-pass reduce-then-apply, or H-blocks with
    # a 3-row halo) instead of the whole-slab blocks used here.
    out_flat = pl.pallas_call(
        kernel,
        out_shape=jax.ShapeDtypeStruct((N, C, HW), x.dtype),
        grid_spec=pltpu.PrefetchScalarGridSpec(
            num_scalar_prefetch=0,
            grid=(N // Nb,),
            in_specs=[
                pl.BlockSpec(memory_space=pltpu.MemorySpace.SMEM),   # conv weights
                pl.BlockSpec(memory_space=pltpu.MemorySpace.SMEM),   # conv bias
                pl.BlockSpec((1, HW), lambda n: (0, 0)),             # column ids
                pl.BlockSpec((Nb, C, HW), lambda n: (n, 0, 0)),      # x slab
            ],
            out_specs=pl.BlockSpec((Nb, C, HW), lambda n: (n, 0, 0)),
            scratch_shapes=[pltpu.VMEM((Nb, BUF), jnp.float32),
                            pltpu.VMEM((Nb, BUF), jnp.float32)],
        ),
        compiler_params=pltpu.CompilerParams(
            dimension_semantics=("parallel",),
            vmem_limit_bytes=_vmem_limit_bytes(per_step),
        ),
        cost_estimate=cost,
    )
    return out_flat(w_flat, bias, col_ids, x_flat).reshape(N, C, H, W)


def cbam_reference(x, spatial_w, spatial_b):
    """Pure-JAX reference matching the PyTorch forward semantics."""
    x32 = x.astype(jnp.float32)
    N, C, H, W = x.shape
    avg = jnp.mean(x32, axis=1, keepdims=True)                # (N,1,H,W)
    mx = jnp.max(x32, axis=1, keepdims=True)                  # (N,1,H,W)
    feat = jnp.concatenate([avg, mx], axis=1)                 # (N,2,H,W): [avg, max]
    padf = jnp.pad(feat, ((0, 0), (0, 0), (PAD, PAD), (PAD, PAD)))
    acc = jnp.zeros((N, 1, H, W), jnp.float32) + spatial_b[0]
    for c in range(2):
        for ki in range(KSIZE):
            for kj in range(KSIZE):
                acc = acc + spatial_w[0, c, ki, kj] * padf[:, c:c + 1, ki:ki + H, kj:kj + W]
    att = 1.0 / (1.0 + jnp.exp(-acc))
    return (x32 * att).astype(x.dtype)


if __name__ == "__main__":
    key = jax.random.PRNGKey(0)
    k1, k2, k3, k4, k5 = jax.random.split(key, 5)

    N, C, H, W = 2, 16, 16, 16
    reduction = 16
    x = jax.random.normal(k1, (N, C, H, W), jnp.float32)

    # spatial_att params: Conv2d(2, 1, kernel_size=7, padding=3)
    spatial_w = jax.random.normal(k2, (1, 2, KSIZE, KSIZE), jnp.float32) * 0.1
    spatial_b = jax.random.normal(k3, (1,), jnp.float32) * 0.1

    # channel_att params (created only for fidelity with __init__: the PyTorch
    # forward overwrites their result before use, so they never affect the output).
    ca_w1 = jax.random.normal(k4, (C // reduction, C, 1, 1), jnp.float32) * 0.1
    ca_w2 = jax.random.normal(k5, (C, C // reduction, 1, 1), jnp.float32) * 0.1
    del ca_w1, ca_w2

    out = jax.block_until_ready(cbam_forward(x, spatial_w, spatial_b))
    ref = cbam_reference(x, spatial_w, spatial_b)

    assert out.shape == x.shape and out.dtype == x.dtype
    assert jnp.allclose(out, ref, rtol=1e-3, atol=1e-3), "mismatch vs reference"
    print("KERNEL_OK")
</pallas_src>

<mosaic_0001>
module attributes {stable_mosaic.version = 11 : i64} {
  func.func @_cbam_kernel(%arg0: i32, %arg1: memref<98xf32, #tpu.memory_space<smem>>, %arg2: memref<1xf32, #tpu.memory_space<smem>>, %arg3: memref<1x256xi32, #tpu.memory_space<vmem>>, %arg4: memref<1x16x256xf32, #tpu.memory_space<vmem>>, %arg5: memref<1x16x256xf32, #tpu.memory_space<vmem>>, %arg6: memref<1x512xf32, #tpu.memory_space<vmem>>, %arg7: memref<1x512xf32, #tpu.memory_space<vmem>>) attributes {dimension_semantics = [#tpu.dimension_semantics<parallel>], iteration_bounds = array<i64: 2>, scalar_prefetch = 0 : i64, scratch_operands = 2 : i64, tpu.core_type = #tpu.core_type<tc>, window_params = [{transform_indices = @transform_0, window_bounds = array<i64: 98>}, {transform_indices = @transform_1, window_bounds = array<i64: 1>}, {pipeline_mode = #tpu.pipeline_mode<synchronous>, transform_indices = @transform_2, window_bounds = array<i64: 1, 256>}, {transform_indices = @transform_3, window_bounds = array<i64: 1, 16, 256>}, {transform_indices = @transform_4, window_bounds = array<i64: 1, 16, 256>}]} {
    %cst = arith.constant 0.000000e+00 : f32
    %0 = vector.broadcast %cst : f32 to vector<1x128xf32>
    %c0 = arith.constant 0 : index
    %c0_0 = arith.constant 0 : index
    %1 = vector.load %arg6[%c0, %c0_0] : memref<1x512xf32, #tpu.memory_space<vmem>>, vector<1x128xf32>
    tpu.vector_store %arg6[%c0, %c0_0], %0 {strides = array<i32>} : memref<1x512xf32, #tpu.memory_space<vmem>>, vector<1x128xf32>,
    %cst_1 = arith.constant 0.000000e+00 : f32
    %2 = vector.broadcast %cst_1 : f32 to vector<1x128xf32>
    %c0_2 = arith.constant 0 : index
    %c0_3 = arith.constant 0 : index
    %3 = vector.load %arg7[%c0_2, %c0_3] : memref<1x512xf32, #tpu.memory_space<vmem>>, vector<1x128xf32>
    tpu.vector_store %arg7[%c0_2, %c0_3], %2 {strides = array<i32>} : memref<1x512xf32, #tpu.memory_space<vmem>>, vector<1x128xf32>,
    %cst_4 = arith.constant 0.000000e+00 : f32
    %4 = vector.broadcast %cst_4 : f32 to vector<1x128xf32>
    %c0_5 = arith.constant 0 : index
    %c384 = arith.constant 384 : index
    %5 = vector.load %arg6[%c0_5, %c384] : memref<1x512xf32, #tpu.memory_space<vmem>>, vector<1x128xf32>
    tpu.vector_store %arg6[%c0_5, %c384], %4 {strides = array<i32>} : memref<1x512xf32, #tpu.memory_space<vmem>>, vector<1x128xf32>,
    %cst_6 = arith.constant 0.000000e+00 : f32
    %6 = vector.broadcast %cst_6 : f32 to vector<1x128xf32>
    %c0_7 = arith.constant 0 : index
    %c384_8 = arith.constant 384 : index
    %7 = vector.load %arg7[%c0_7, %c384_8] : memref<1x512xf32, #tpu.memory_space<vmem>>, vector<1x128xf32>
    tpu.vector_store %arg7[%c0_7, %c384_8], %6 {strides = array<i32>} : memref<1x512xf32, #tpu.memory_space<vmem>>, vector<1x128xf32>,
    %cst_9 = arith.constant 0.000000e+00 : f32
    %8 = vector.broadcast %cst_9 : f32 to vector<1x256xf32>
    %cst_10 = arith.constant 0xFF800000 : f32
    %9 = vector.broadcast %cst_10 : f32 to vector<1x256xf32>
    %c0_i32 = arith.constant 0 : i32
    %c0_i32_11 = arith.constant 0 : i32
    %c0_i32_12 = arith.constant 0 : i32
    %10 = tpu.memref_slice %arg4[%c0_i32, %c0_i32_11, %c0_i32_12] : memref<1x16x256xf32, #tpu.memory_space<vmem>> -> memref<1x16x256xf32, #tpu.memory_space<vmem>>
    %11 = tpu.memref_squeeze %10 : memref<1x16x256xf32, #tpu.memory_space<vmem>> -> memref<16x256xf32, #tpu.memory_space<vmem>>
    %c0_13 = arith.constant 0 : index
    %c0_14 = arith.constant 0 : index
    %12 = vector.load %11[%c0_13, %c0_14] : memref<16x256xf32, #tpu.memory_space<vmem>>, vector<8x256xf32>
    %cst_15 = arith.constant dense<0.000000e+00> : vector<256xf32>
    %13 = vector.multi_reduction <add>, %12, %cst_15 [0] : vector<8x256xf32> to vector<256xf32>
    %14 = vector.shape_cast %13 : vector<256xf32> to vector<1x256xf32>
    %15 = arith.addf %8, %14 : vector<1x256xf32>
    %cst_16 = arith.constant dense<0xFF800000> : vector<256xf32>
    %16 = vector.multi_reduction <maximumf>, %12, %cst_16 [0] : vector<8x256xf32> to vector<256xf32>
    %17 = vector.shape_cast %16 : vector<256xf32> to vector<1x256xf32>
    %18 = arith.maximumf %9, %17 : vector<1x256xf32>
    %c0_i32_17 = arith.constant 0 : i32
    %c0_i32_18 = arith.constant 0 : i32
    %c0_i32_19 = arith.constant 0 : i32
    %19 = tpu.memref_slice %arg4[%c0_i32_17, %c0_i32_18, %c0_i32_19] : memref<1x16x256xf32, #tpu.memory_space<vmem>> -> memref<1x16x256xf32, #tpu.memory_space<vmem>>
    %20 = tpu.memref_squeeze %19 : memref<1x16x256xf32, #tpu.memory_space<vmem>> -> memref<16x256xf32, #tpu.memory_space<vmem>>
    %c8 = arith.constant 8 : index
    %c0_20 = arith.constant 0 : index
    %21 = vector.load %20[%c8, %c0_20] : memref<16x256xf32, #tpu.memory_space<vmem>>, vector<8x256xf32>
    %cst_21 = arith.constant dense<0.000000e+00> : vector<256xf32>
    %22 = vector.multi_reduction <add>, %21, %cst_21 [0] : vector<8x256xf32> to vector<256xf32>
    %23 = vector.shape_cast %22 : vector<256xf32> to vector<1x256xf32>
    %24 = arith.addf %15, %23 : vector<1x256xf32>
    %cst_22 = arith.constant dense<0xFF800000> : vector<256xf32>
    %25 = vector.multi_reduction <maximumf>, %21, %cst_22 [0] : vector<8x256xf32> to vector<256xf32>
    %26 = vector.shape_cast %25 : vector<256xf32> to vector<1x256xf32>
    %27 = arith.maximumf %18, %26 : vector<1x256xf32>
    %cst_23 = arith.constant 6.250000e-02 : f32
    %28 = vector.broadcast %cst_23 : f32 to vector<1x256xf32>
    %29 = arith.mulf %24, %28 : vector<1x256xf32>
    %c0_24 = arith.constant 0 : index
    %c128 = arith.constant 128 : index
    %30 = vector.load %arg6[%c0_24, %c128] : memref<1x512xf32, #tpu.memory_space<vmem>>, vector<1x256xf32>
    tpu.vector_store %arg6[%c0_24, %c128], %29 {strides = array<i32>} : memref<1x512xf32, #tpu.memory_space<vmem>>, vector<1x256xf32>,
    %c0_25 = arith.constant 0 : index
    %c128_26 = arith.constant 128 : index
    %31 = vector.load %arg7[%c0_25, %c128_26] : memref<1x512xf32, #tpu.memory_space<vmem>>, vector<1x256xf32>
    tpu.vector_store %arg7[%c0_25, %c128_26], %27 {strides = array<i32>} : memref<1x512xf32, #tpu.memory_space<vmem>>, vector<1x256xf32>,
    %c0_27 = arith.constant 0 : index
    %c0_28 = arith.constant 0 : index
    %32 = vector.load %arg3[%c0_27, %c0_28] : memref<1x256xi32, #tpu.memory_space<vmem>>, vector<1x256xi32>
    %cst_29 = arith.constant 0.000000e+00 : f32
    %33 = vector.broadcast %cst_29 : f32 to vector<1x256xf32>
    %c0_30 = arith.constant 0 : index
    %34 = memref.load %arg2[%c0_30] : memref<1xf32, #tpu.memory_space<smem>>
    %35 = vector.broadcast %34 : f32 to vector<1x256xf32>
    %36 = arith.addf %33, %35 : vector<1x256xf32>
    %cst_31 = arith.constant 0.000000e+00 : f32
    %37 = vector.broadcast %cst_31 : f32 to vector<1x256xf32>
    %c0_32 = arith.constant 0 : index
    %c77 = arith.constant 77 : index
    %38 = vector.load %arg6[%c0_32, %c77] : memref<1x512xf32, #tpu.memory_space<vmem>>, vector<1x256xf32>
    %c0_33 = arith.constant 0 : index
    %c77_34 = arith.constant 77 : index
    %39 = vector.load %arg7[%c0_33, %c77_34] : memref<1x512xf32, #tpu.memory_space<vmem>>, vector<1x256xf32>
    %c0_35 = arith.constant 0 : index
    %40 = memref.load %arg1[%c0_35] : memref<98xf32, #tpu.memory_space<smem>>
    %41 = vector.broadcast %40 : f32 to vector<1x256xf32>
    %42 = arith.mulf %41, %38 : vector<1x256xf32>
    %43 = arith.addf %37, %42 : vector<1x256xf32>
    %c49 = arith.constant 49 : index
    %44 = memref.load %arg1[%c49] : memref<98xf32, #tpu.memory_space<smem>>
    %45 = vector.broadcast %44 : f32 to vector<1x256xf32>
    %46 = arith.mulf %45, %39 : vector<1x256xf32>
    %47 = arith.addf %43, %46 : vector<1x256xf32>
    %c0_36 = arith.constant 0 : index
    %c93 = arith.constant 93 : index
    %48 = vector.load %arg6[%c0_36, %c93] : memref<1x512xf32, #tpu.memory_space<vmem>>, vector<1x256xf32>
    %c0_37 = arith.constant 0 : index
    %c93_38 = arith.constant 93 : index
    %49 = vector.load %arg7[%c0_37, %c93_38] : memref<1x512xf32, #tpu.memory_space<vmem>>, vector<1x256xf32>
    %c7 = arith.constant 7 : index
    %50 = memref.load %arg1[%c7] : memref<98xf32, #tpu.memory_space<smem>>
    %51 = vector.broadcast %50 : f32 to vector<1x256xf32>
    %52 = arith.mulf %51, %48 : vector<1x256xf32>
    %53 = arith.addf %47, %52 : vector<1x256xf32>
    %c56 = arith.constant 56 : index
    %54 = memref.load %arg1[%c56] : memref<98xf32, #tpu.memory_space<smem>>
    %55 = vector.broadcast %54 : f32 to vector<1x256xf32>
    %56 = arith.mulf %55, %49 : vector<1x256xf32>
    %57 = arith.addf %53, %56 : vector<1x256xf32>
    %c0_39 = arith.constant 0 : index
    %c109 = arith.constant 109 : index
    %58 = vector.load %arg6[%c0_39, %c109] : memref<1x512xf32, #tpu.memory_space<vmem>>, vector<1x256xf32>
    %c0_40 = arith.constant 0 : index
    %c109_41 = arith.constant 109 : index
    %59 = vector.load %arg7[%c0_40, %c109_41] : memref<1x512xf32, #tpu.memory_space<vmem>>, vector<1x256xf32>
    %c14 = arith.constant 14 : index
    %60 = memref.load %arg1[%c14] : memref<98xf32, #tpu.memory_space<smem>>
    %61 = vector.broadcast %60 : f32 to vector<1x256xf32>
    %62 = arith.mulf %61, %58 : vector<1x256xf32>
    %63 = arith.addf %57, %62 : vector<1x256xf32>
    %c63 = arith.constant 63 : index
    %64 = memref.load %arg1[%c63] : memref<98xf32, #tpu.memory_space<smem>>
    %65 = vector.broadcast %64 : f32 to vector<1x256xf32>
    %66 = arith.mulf %65, %59 : vector<1x256xf32>
    %67 = arith.addf %63, %66 : vector<1x256xf32>
    %c0_42 = arith.constant 0 : index
    %c125 = arith.constant 125 : index
    %68 = vector.load %arg6[%c0_42, %c125] : memref<1x512xf32, #tpu.memory_space<vmem>>, vector<1x256xf32>
    %c0_43 = arith.constant 0 : index
    %c125_44 = arith.constant 125 : index
    %69 = vector.load %arg7[%c0_43, %c125_44] : memref<1x512xf32, #tpu.memory_space<vmem>>, vector<1x256xf32>
    %c21 = arith.constant 21 : index
    %70 = memref.load %arg1[%c21] : memref<98xf32, #tpu.memory_space<smem>>
    %71 = vector.broadcast %70 : f32 to vector<1x256xf32>
    %72 = arith.mulf %71, %68 : vector<1x256xf32>
    %73 = arith.addf %67, %72 : vector<1x256xf32>
    %c70 = arith.constant 70 : index
    %74 = memref.load %arg1[%c70] : memref<98xf32, #tpu.memory_space<smem>>
    %75 = vector.broadcast %74 : f32 to vector<1x256xf32>
    %76 = arith.mulf %75, %69 : vector<1x256xf32>
    %77 = arith.addf %73, %76 : vector<1x256xf32>
    %c0_45 = arith.constant 0 : index
    %c141 = arith.constant 141 : index
    %78 = vector.load %arg6[%c0_45, %c141] : memref<1x512xf32, #tpu.memory_space<vmem>>, vector<1x256xf32>
    %c0_46 = arith.constant 0 : index
    %c141_47 = arith.constant 141 : index
    %79 = vector.load %arg7[%c0_46, %c141_47] : memref<1x512xf32, #tpu.memory_space<vmem>>, vector<1x256xf32>
    %c28 = arith.constant 28 : index
    %80 = memref.load %arg1[%c28] : memref<98xf32, #tpu.memory_space<smem>>
    %81 = vector.broadcast %80 : f32 to vector<1x256xf32>
    %82 = arith.mulf %81, %78 : vector<1x256xf32>
    %83 = arith.addf %77, %82 : vector<1x256xf32>
    %c77_48 = arith.constant 77 : index
    %84 = memref.load %arg1[%c77_48] : memref<98xf32, #tpu.memory_space<smem>>
    %85 = vector.broadcast %84 : f32 to vector<1x256xf32>
    %86 = arith.mulf %85, %79 : vector<1x256xf32>
    %87 = arith.addf %83, %86 : vector<1x256xf32>
    %c0_49 = arith.constant 0 : index
    %c157 = arith.constant 157 : index
    %88 = vector.load %arg6[%c0_49, %c157] : memref<1x512xf32, #tpu.memory_space<vmem>>, vector<1x256xf32>
    %c0_50 = arith.constant 0 : index
    %c157_51 = arith.constant 157 : index
    %89 = vector.load %arg7[%c0_50, %c157_51] : memref<1x512xf32, #tpu.memory_space<vmem>>, vector<1x256xf32>
    %c35 = arith.constant 35 : index
    %90 = memref.load %arg1[%c35] : memref<98xf32, #tpu.memory_space<smem>>
    %91 = vector.broadcast %90 : f32 to vector<1x256xf32>
    %92 = arith.mulf %91, %88 : vector<1x256xf32>
    %93 = arith.addf %87, %92 : vector<1x256xf32>
    %c84 = arith.constant 84 : index
    %94 = memref.load %arg1[%c84] : memref<98xf32, #tpu.memory_space<smem>>
    %95 = vector.broadcast %94 : f32 to vector<1x256xf32>
    %96 = arith.mulf %95, %89 : vector<1x256xf32>
    %97 = arith.addf %93, %96 : vector<1x256xf32>
    %c0_52 = arith.constant 0 : index
    %c173 = arith.constant 173 : index
    %98 = vector.load %arg6[%c0_52, %c173] : memref<1x512xf32, #tpu.memory_space<vmem>>, vector<1x256xf32>
    %c0_53 = arith.constant 0 : index
    %c173_54 = arith.constant 173 : index
    %99 = vector.load %arg7[%c0_53, %c173_54] : memref<1x512xf32, #tpu.memory_space<vmem>>, vector<1x256xf32>
    %c42 = arith.constant 42 : index
    %100 = memref.load %arg1[%c42] : memref<98xf32, #tpu.memory_space<smem>>
    %101 = vector.broadcast %100 : f32 to vector<1x256xf32>
    %102 = arith.mulf %101, %98 : vector<1x256xf32>
    %103 = arith.addf %97, %102 : vector<1x256xf32>
    %c91 = arith.constant 91 : index
    %104 = memref.load %arg1[%c91] : memref<98xf32, #tpu.memory_space<smem>>
    %105 = vector.broadcast %104 : f32 to vector<1x256xf32>
    %106 = arith.mulf %105, %99 : vector<1x256xf32>
    %107 = arith.addf %103, %106 : vector<1x256xf32>
    %c-3_i32 = arith.constant -3 : i32
    %108 = vector.broadcast %c-3_i32 : i32 to vector<1x256xi32>
    %109 = arith.addi %32, %108 : vector<1x256xi32>
    %c0_i32_55 = arith.constant 0 : i32
    %110 = vector.broadcast %c0_i32_55 : i32 to vector<1x256xi32>
    %111 = arith.cmpi sge, %109, %110 : vector<1x256xi32>
    %c-3_i32_56 = arith.constant -3 : i32
    %112 = vector.broadcast %c-3_i32_56 : i32 to vector<1x256xi32>
    %113 = arith.addi %32, %112 : vector<1x256xi32>
    %c16_i32 = arith.constant 16 : i32
    %114 = vector.broadcast %c16_i32 : i32 to vector<1x256xi32>
    %115 = arith.cmpi slt, %113, %114 : vector<1x256xi32>
    %116 = arith.andi %111, %115 : vector<1x256xi1>
    %cst_57 = arith.constant 0.000000e+00 : f32
    %117 = vector.broadcast %cst_57 : f32 to vector<1x256xf32>
    %118 = arith.select %116, %107, %117 : vector<1x256xi1>, vector<1x256xf32>
    %119 = arith.addf %36, %118 : vector<1x256xf32>
    %cst_58 = arith.constant 0.000000e+00 : f32
    %120 = vector.broadcast %cst_58 : f32 to vector<1x256xf32>
    %c0_59 = arith.constant 0 : index
    %c78 = arith.constant 78 : index
    %121 = vector.load %arg6[%c0_59, %c78] : memref<1x512xf32, #tpu.memory_space<vmem>>, vector<1x256xf32>
    %c0_60 = arith.constant 0 : index
    %c78_61 = arith.constant 78 : index
    %122 = vector.load %arg7[%c0_60, %c78_61] : memref<1x512xf32, #tpu.memory_space<vmem>>, vector<1x256xf32>
    %c1 = arith.constant 1 : index
    %123 = memref.load %arg1[%c1] : memref<98xf32, #tpu.memory_space<smem>>
    %124 = vector.broadcast %123 : f32 to vector<1x256xf32>
    %125 = arith.mulf %124, %121 : vector<1x256xf32>
    %126 = arith.addf %120, %125 : vector<1x256xf32>
    %c50 = arith.constant 50 : index
    %127 = memref.load %arg1[%c50] : memref<98xf32, #tpu.memory_space<smem>>
    %128 = vector.broadcast %127 : f32 to vector<1x256xf32>
    %129 = arith.mulf %128, %122 : vector<1x256xf32>
    %130 = arith.addf %126, %129 : vector<1x256xf32>
    %c0_62 = arith.constant 0 : index
    %c94 = arith.constant 94 : index
    %131 = vector.load %arg6[%c0_62, %c94] : memref<1x512xf32, #tpu.memory_space<vmem>>, vector<1x256xf32>
    %c0_63 = arith.constant 0 : index
    %c94_64 = arith.constant 94 : index
    %132 = vector.load %arg7[%c0_63, %c94_64] : memref<1x512xf32, #tpu.memory_space<vmem>>, vector<1x256xf32>
    %c8_65 = arith.constant 8 : index
    %133 = memref.load %arg1[%c8_65] : memref<98xf32, #tpu.memory_space<smem>>
    %134 = vector.broadcast %133 : f32 to vector<1x256xf32>
    %135 = arith.mulf %134, %131 : vector<1x256xf32>
    %136 = arith.addf %130, %135 : vector<1x256xf32>
    %c57 = arith.constant 57 : index
    %137 = memref.load %arg1[%c57] : memref<98xf32, #tpu.memory_space<smem>>
    %138 = vector.broadcast %137 : f32 to vector<1x256xf32>
    %139 = arith.mulf %138, %132 : vector<1x256xf32>
    %140 = arith.addf %136, %139 : vector<1x256xf32>
    %c0_66 = arith.constant 0 : index
    %c110 = arith.constant 110 : index
    %141 = vector.load %arg6[%c0_66, %c110] : memref<1x512xf32, #tpu.memory_space<vmem>>, vector<1x256xf32>
    %c0_67 = arith.constant 0 : index
    %c110_68 = arith.constant 110 : index
    %142 = vector.load %arg7[%c0_67, %c110_68] : memref<1x512xf32, #tpu.memory_space<vmem>>, vector<1x256xf32>
    %c15 = arith.constant 15 : index
    %143 = memref.load %arg1[%c15] : memref<98xf32, #tpu.memory_space<smem>>
    %144 = vector.broadcast %143 : f32 to vector<1x256xf32>
    %145 = arith.mulf %144, %141 : vector<1x256xf32>
    %146 = arith.addf %140, %145 : vector<1x256xf32>
    %c64 = arith.constant 64 : index
    %147 = memref.load %arg1[%c64] : memref<98xf32, #tpu.memory_space<smem>>
    %148 = vector.broadcast %147 : f32 to vector<1x256xf32>
    %149 = arith.mulf %148, %142 : vector<1x256xf32>
    %150 = arith.addf %146, %149 : vector<1x256xf32>
    %c0_69 = arith.constant 0 : index
    %c126 = arith.constant 126 : index
    %151 = vector.load %arg6[%c0_69, %c126] : memref<1x512xf32, #tpu.memory_space<vmem>>, vector<1x256xf32>
    %c0_70 = arith.constant 0 : index
    %c126_71 = arith.constant 126 : index
    %152 = vector.load %arg7[%c0_70, %c126_71] : memref<1x512xf32, #tpu.memory_space<vmem>>, vector<1x256xf32>
    %c22 = arith.constant 22 : index
    %153 = memref.load %arg1[%c22] : memref<98xf32, #tpu.memory_space<smem>>
    %154 = vector.broadcast %153 : f32 to vector<1x256xf32>
    %155 = arith.mulf %154, %151 : vector<1x256xf32>
    %156 = arith.addf %150, %155 : vector<1x256xf32>
    %c71 = arith.constant 71 : index
    %157 = memref.load %arg1[%c71] : memref<98xf32, #tpu.memory_space<smem>>
    %158 = vector.broadcast %157 : f32 to vector<1x256xf32>
    %159 = arith.mulf %158, %152 : vector<1x256xf32>
    %160 = arith.addf %156, %159 : vector<1x256xf32>
    %c0_72 = arith.constant 0 : index
    %c142 = arith.constant 142 : index
    %161 = vector.load %arg6[%c0_72, %c142] : memref<1x512xf32, #tpu.memory_space<vmem>>, vector<1x256xf32>
    %c0_73 = arith.constant 0 : index
    %c142_74 = arith.constant 142 : index
    %162 = vector.load %arg7[%c0_73, %c142_74] : memref<1x512xf32, #tpu.memory_space<vmem>>, vector<1x256xf32>
    %c29 = arith.constant 29 : index
    %163 = memref.load %arg1[%c29] : memref<98xf32, #tpu.memory_space<smem>>
    %164 = vector.broadcast %163 : f32 to vector<1x256xf32>
    %165 = arith.mulf %164, %161 : vector<1x256xf32>
    %166 = arith.addf %160, %165 : vector<1x256xf32>
    %c78_75 = arith.constant 78 : index
    %167 = memref.load %arg1[%c78_75] : memref<98xf32, #tpu.memory_space<smem>>
    %168 = vector.broadcast %167 : f32 to vector<1x256xf32>
    %169 = arith.mulf %168, %162 : vector<1x256xf32>
    %170 = arith.addf %166, %169 : vector<1x256xf32>
    %c0_76 = arith.constant 0 : index
    %c158 = arith.constant 158 : index
    %171 = vector.load %arg6[%c0_76, %c158] : memref<1x512xf32, #tpu.memory_space<vmem>>, vector<1x256xf32>
    %c0_77 = arith.constant 0 : index
    %c158_78 = arith.constant 158 : index
    %172 = vector.load %arg7[%c0_77, %c158_78] : memref<1x512xf32, #tpu.memory_space<vmem>>, vector<1x256xf32>
    %c36 = arith.constant 36 : index
    %173 = memref.load %arg1[%c36] : memref<98xf32, #tpu.memory_space<smem>>
    %174 = vector.broadcast %173 : f32 to vector<1x256xf32>
    %175 = arith.mulf %174, %171 : vector<1x256xf32>
    %176 = arith.addf %170, %175 : vector<1x256xf32>
    %c85 = arith.constant 85 : index
    %177 = memref.load %arg1[%c85] : memref<98xf32, #tpu.memory_space<smem>>
    %178 = vector.broadcast %177 : f32 to vector<1x256xf32>
    %179 = arith.mulf %178, %172 : vector<1x256xf32>
    %180 = arith.addf %176, %179 : vector<1x256xf32>
    %c0_79 = arith.constant 0 : index
    %c174 = arith.constant 174 : index
    %181 = vector.load %arg6[%c0_79, %c174] : memref<1x512xf32, #tpu.memory_space<vmem>>, vector<1x256xf32>
    %c0_80 = arith.constant 0 : index
    %c174_81 = arith.constant 174 : index
    %182 = vector.load %arg7[%c0_80, %c174_81] : memref<1x512xf32, #tpu.memory_space<vmem>>, vector<1x256xf32>
    %c43 = arith.constant 43 : index
    %183 = memref.load %arg1[%c43] : memref<98xf32, #tpu.memory_space<smem>>
    %184 = vector.broadcast %183 : f32 to vector<1x256xf32>
    %185 = arith.mulf %184, %181 : vector<1x256xf32>
    %186 = arith.addf %180, %185 : vector<1x256xf32>
    %c92 = arith.constant 92 : index
    %187 = memref.load %arg1[%c92] : memref<98xf32, #tpu.memory_space<smem>>
    %188 = vector.broadcast %187 : f32 to vector<1x256xf32>
    %189 = arith.mulf %188, %182 : vector<1x256xf32>
    %190 = arith.addf %186, %189 : vector<1x256xf32>
    %c-2_i32 = arith.constant -2 : i32
    %191 = vector.broadcast %c-2_i32 : i32 to vector<1x256xi32>
    %192 = arith.addi %32, %191 : vector<1x256xi32>
    %c0_i32_82 = arith.constant 0 : i32
    %193 = vector.broadcast %c0_i32_82 : i32 to vector<1x256xi32>
    %194 = arith.cmpi sge, %192, %193 : vector<1x256xi32>
    %c-2_i32_83 = arith.constant -2 : i32
    %195 = vector.broadcast %c-2_i32_83 : i32 to vector<1x256xi32>
    %196 = arith.addi %32, %195 : vector<1x256xi32>
    %c16_i32_84 = arith.constant 16 : i32
    %197 = vector.broadcast %c16_i32_84 : i32 to vector<1x256xi32>
    %198 = arith.cmpi slt, %196, %197 : vector<1x256xi32>
    %199 = arith.andi %194, %198 : vector<1x256xi1>
    %cst_85 = arith.constant 0.000000e+00 : f32
    %200 = vector.broadcast %cst_85 : f32 to vector<1x256xf32>
    %201 = arith.select %199, %190, %200 : vector<1x256xi1>, vector<1x256xf32>
    %202 = arith.addf %119, %201 : vector<1x256xf32>
    %cst_86 = arith.constant 0.000000e+00 : f32
    %203 = vector.broadcast %cst_86 : f32 to vector<1x256xf32>
    %c0_87 = arith.constant 0 : index
    %c79 = arith.constant 79 : index
    %204 = vector.load %arg6[%c0_87, %c79] : memref<1x512xf32, #tpu.memory_space<vmem>>, vector<1x256xf32>
    %c0_88 = arith.constant 0 : index
    %c79_89 = arith.constant 79 : index
    %205 = vector.load %arg7[%c0_88, %c79_89] : memref<1x512xf32, #tpu.memory_space<vmem>>, vector<1x256xf32>
    %c2 = arith.constant 2 : index
    %206 = memref.load %arg1[%c2] : memref<98xf32, #tpu.memory_space<smem>>
    %207 = vector.broadcast %206 : f32 to vector<1x256xf32>
    %208 = arith.mulf %207, %204 : vector<1x256xf32>
    %209 = arith.addf %203, %208 : vector<1x256xf32>
    %c51 = arith.constant 51 : index
    %210 = memref.load %arg1[%c51] : memref<98xf32, #tpu.memory_space<smem>>
    %211 = vector.broadcast %210 : f32 to vector<1x256xf32>
    %212 = arith.mulf %211, %205 : vector<1x256xf32>
    %213 = arith.addf %209, %212 : vector<1x256xf32>
    %c0_90 = arith.constant 0 : index
    %c95 = arith.constant 95 : index
    %214 = vector.load %arg6[%c0_90, %c95] : memref<1x512xf32, #tpu.memory_space<vmem>>, vector<1x256xf32>
    %c0_91 = arith.constant 0 : index
    %c95_92 = arith.constant 95 : index
    %215 = vector.load %arg7[%c0_91, %c95_92] : memref<1x512xf32, #tpu.memory_space<vmem>>, vector<1x256xf32>
    %c9 = arith.constant 9 : index
    %216 = memref.load %arg1[%c9] : memref<98xf32, #tpu.memory_space<smem>>
    %217 = vector.broadcast %216 : f32 to vector<1x256xf32>
    %218 = arith.mulf %217, %214 : vector<1x256xf32>
    %219 = arith.addf %213, %218 : vector<1x256xf32>
    %c58 = arith.constant 58 : index
    %220 = memref.load %arg1[%c58] : memref<98xf32, #tpu.memory_space<smem>>
    %221 = vector.broadcast %220 : f32 to vector<1x256xf32>
    %222 = arith.mulf %221, %215 : vector<1x256xf32>
    %223 = arith.addf %219, %222 : vector<1x256xf32>
    %c0_93 = arith.constant 0 : index
    %c111 = arith.constant 111 : index
    %224 = vector.load %arg6[%c0_93, %c111] : memref<1x512xf32, #tpu.memory_space<vmem>>, vector<1x256xf32>
    %c0_94 = arith.constant 0 : index
    %c111_95 = arith.constant 111 : index
    %225 = vector.load %arg7[%c0_94, %c111_95] : memref<1x512xf32, #tpu.memory_space<vmem>>, vector<1x256xf32>
    %c16 = arith.constant 16 : index
    %226 = memref.load %arg1[%c16] : memref<98xf32, #tpu.memory_space<smem>>
    %227 = vector.broadcast %226 : f32 to vector<1x256xf32>
    %228 = arith.mulf %227, %224 : vector<1x256xf32>
    %229 = arith.addf %223, %228 : vector<1x256xf32>
    %c65 = arith.constant 65 : index
    %230 = memref.load %arg1[%c65] : memref<98xf32, #tpu.memory_space<smem>>
    %231 = vector.broadcast %230 : f32 to vector<1x256xf32>
    %232 = arith.mulf %231, %225 : vector<1x256xf32>
    %233 = arith.addf %229, %232 : vector<1x256xf32>
    %c0_96 = arith.constant 0 : index
    %c127 = arith.constant 127 : index
    %234 = vector.load %arg6[%c0_96, %c127] : memref<1x512xf32, #tpu.memory_space<vmem>>, vector<1x256xf32>
    %c0_97 = arith.constant 0 : index
    %c127_98 = arith.constant 127 : index
    %235 = vector.load %arg7[%c0_97, %c127_98] : memref<1x512xf32, #tpu.memory_space<vmem>>, vector<1x256xf32>
    %c23 = arith.constant 23 : index
    %236 = memref.load %arg1[%c23] : memref<98xf32, #tpu.memory_space<smem>>
    %237 = vector.broadcast %236 : f32 to vector<1x256xf32>
    %238 = arith.mulf %237, %234 : vector<1x256xf32>
    %239 = arith.addf %233, %238 : vector<1x256xf32>
    %c72 = arith.constant 72 : index
    %240 = memref.load %arg1[%c72] : memref<98xf32, #tpu.memory_space<smem>>
    %241 = vector.broadcast %240 : f32 to vector<1x256xf32>
    %242 = arith.mulf %241, %235 : vector<1x256xf32>
    %243 = arith.addf %239, %242 : vector<1x256xf32>
    %c0_99 = arith.constant 0 : index
    %c143 = arith.constant 143 : index
    %244 = vector.load %arg6[%c0_99, %c143] : memref<1x512xf32, #tpu.memory_space<vmem>>, vector<1x256xf32>
    %c0_100 = arith.constant 0 : index
    %c143_101 = arith.constant 143 : index
    %245 = vector.load %arg7[%c0_100, %c143_101] : memref<1x512xf32, #tpu.memory_space<vmem>>, vector<1x256xf32>
    %c30 = arith.constant 30 : index
    %246 = memref.load %arg1[%c30] : memref<98xf32, #tpu.memory_space<smem>>
    %247 = vector.broadcast %246 : f32 to vector<1x256xf32>
    %248 = arith.mulf %247, %244 : vector<1x256xf32>
    %249 = arith.addf %243, %248 : vector<1x256xf32>
    %c79_102 = arith.constant 79 : index
    %250 = memref.load %arg1[%c79_102] : memref<98xf32, #tpu.memory_space<smem>>
    %251 = vector.broadcast %250 : f32 to vector<1x256xf32>
    %252 = arith.mulf %251, %245 : vector<1x256xf32>
    %253 = arith.addf %249, %252 : vector<1x256xf32>
    %c0_103 = arith.constant 0 : index
    %c159 = arith.constant 159 : index
    %254 = vector.load %arg6[%c0_103, %c159] : memref<1x512xf32, #tpu.memory_space<vmem>>, vector<1x256xf32>
    %c0_104 = arith.constant 0 : index
    %c159_105 = arith.constant 159 : index
    %255 = vector.load %arg7[%c0_104, %c159_105] : memref<1x512xf32, #tpu.memory_space<vmem>>, vector<1x256xf32>
    %c37 = arith.constant 37 : index
    %256 = memref.load %arg1[%c37] : memref<98xf32, #tpu.memory_space<smem>>
    %257 = vector.broadcast %256 : f32 to vector<1x256xf32>
    %258 = arith.mulf %257, %254 : vector<1x256xf32>
    %259 = arith.addf %253, %258 : vector<1x256xf32>
    %c86 = arith.constant 86 : index
    %260 = memref.load %arg1[%c86] : memref<98xf32, #tpu.memory_space<smem>>
    %261 = vector.broadcast %260 : f32 to vector<1x256xf32>
    %262 = arith.mulf %261, %255 : vector<1x256xf32>
    %263 = arith.addf %259, %262 : vector<1x256xf32>
    %c0_106 = arith.constant 0 : index
    %c175 = arith.constant 175 : index
    %264 = vector.load %arg6[%c0_106, %c175] : memref<1x512xf32, #tpu.memory_space<vmem>>, vector<1x256xf32>
    %c0_107 = arith.constant 0 : index
    %c175_108 = arith.constant 175 : index
    %265 = vector.load %arg7[%c0_107, %c175_108] : memref<1x512xf32, #tpu.memory_space<vmem>>, vector<1x256xf32>
    %c44 = arith.constant 44 : index
    %266 = memref.load %arg1[%c44] : memref<98xf32, #tpu.memory_space<smem>>
    %267 = vector.broadcast %266 : f32 to vector<1x256xf32>
    %268 = arith.mulf %267, %264 : vector<1x256xf32>
    %269 = arith.addf %263, %268 : vector<1x256xf32>
    %c93_109 = arith.constant 93 : index
    %270 = memref.load %arg1[%c93_109] : memref<98xf32, #tpu.memory_space<smem>>
    %271 = vector.broadcast %270 : f32 to vector<1x256xf32>
    %272 = arith.mulf %271, %265 : vector<1x256xf32>
    %273 = arith.addf %269, %272 : vector<1x256xf32>
    %c-1_i32 = arith.constant -1 : i32
    %274 = vector.broadcast %c-1_i32 : i32 to vector<1x256xi32>
    %275 = arith.addi %32, %274 : vector<1x256xi32>
    %c0_i32_110 = arith.constant 0 : i32
    %276 = vector.broadcast %c0_i32_110 : i32 to vector<1x256xi32>
    %277 = arith.cmpi sge, %275, %276 : vector<1x256xi32>
    %c-1_i32_111 = arith.constant -1 : i32
    %278 = vector.broadcast %c-1_i32_111 : i32 to vector<1x256xi32>
    %279 = arith.addi %32, %278 : vector<1x256xi32>
    %c16_i32_112 = arith.constant 16 : i32
    %280 = vector.broadcast %c16_i32_112 : i32 to vector<1x256xi32>
    %281 = arith.cmpi slt, %279, %280 : vector<1x256xi32>
    %282 = arith.andi %277, %281 : vector<1x256xi1>
    %cst_113 = arith.constant 0.000000e+00 : f32
    %283 = vector.broadcast %cst_113 : f32 to vector<1x256xf32>
    %284 = arith.select %282, %273, %283 : vector<1x256xi1>, vector<1x256xf32>
    %285 = arith.addf %202, %284 : vector<1x256xf32>
    %cst_114 = arith.constant 0.000000e+00 : f32
    %286 = vector.broadcast %cst_114 : f32 to vector<1x256xf32>
    %c0_115 = arith.constant 0 : index
    %c80 = arith.constant 80 : index
    %287 = vector.load %arg6[%c0_115, %c80] : memref<1x512xf32, #tpu.memory_space<vmem>>, vector<1x256xf32>
    %c0_116 = arith.constant 0 : index
    %c80_117 = arith.constant 80 : index
    %288 = vector.load %arg7[%c0_116, %c80_117] : memref<1x512xf32, #tpu.memory_space<vmem>>, vector<1x256xf32>
    %c3 = arith.constant 3 : index
    %289 = memref.load %arg1[%c3] : memref<98xf32, #tpu.memory_space<smem>>
    %290 = vector.broadcast %289 : f32 to vector<1x256xf32>
    %291 = arith.mulf %290, %287 : vector<1x256xf32>
    %292 = arith.addf %286, %291 : vector<1x256xf32>
    %c52 = arith.constant 52 : index
    %293 = memref.load %arg1[%c52] : memref<98xf32, #tpu.memory_space<smem>>
    %294 = vector.broadcast %293 : f32 to vector<1x256xf32>
    %295 = arith.mulf %294, %288 : vector<1x256xf32>
    %296 = arith.addf %292, %295 : vector<1x256xf32>
    %c0_118 = arith.constant 0 : index
    %c96 = arith.constant 96 : index
    %297 = vector.load %arg6[%c0_118, %c96] : memref<1x512xf32, #tpu.memory_space<vmem>>, vector<1x256xf32>
    %c0_119 = arith.constant 0 : index
    %c96_120 = arith.constant 96 : index
    %298 = vector.load %arg7[%c0_119, %c96_120] : memref<1x512xf32, #tpu.memory_space<vmem>>, vector<1x256xf32>
    %c10 = arith.constant 10 : index
    %299 = memref.load %arg1[%c10] : memref<98xf32, #tpu.memory_space<smem>>
    %300 = vector.broadcast %299 : f32 to vector<1x256xf32>
    %301 = arith.mulf %300, %297 : vector<1x256xf32>
    %302 = arith.addf %296, %301 : vector<1x256xf32>
    %c59 = arith.constant 59 : index
    %303 = memref.load %arg1[%c59] : memref<98xf32, #tpu.memory_space<smem>>
    %304 = vector.broadcast %303 : f32 to vector<1x256xf32>
    %305 = arith.mulf %304, %298 : vector<1x256xf32>
    %306 = arith.addf %302, %305 : vector<1x256xf32>
    %c0_121 = arith.constant 0 : index
    %c112 = arith.constant 112 : index
    %307 = vector.load %arg6[%c0_121, %c112] : memref<1x512xf32, #tpu.memory_space<vmem>>, vector<1x256xf32>
    %c0_122 = arith.constant 0 : index
    %c112_123 = arith.constant 112 : index
    %308 = vector.load %arg7[%c0_122, %c112_123] : memref<1x512xf32, #tpu.memory_space<vmem>>, vector<1x256xf32>
    %c17 = arith.constant 17 : index
    %309 = memref.load %arg1[%c17] : memref<98xf32, #tpu.memory_space<smem>>
    %310 = vector.broadcast %309 : f32 to vector<1x256xf32>
    %311 = arith.mulf %310, %307 : vector<1x256xf32>
    %312 = arith.addf %306, %311 : vector<1x256xf32>
    %c66 = arith.constant 66 : index
    %313 = memref.load %arg1[%c66] : memref<98xf32, #tpu.memory_space<smem>>
    %314 = vector.broadcast %313 : f32 to vector<1x256xf32>
    %315 = arith.mulf %314, %308 : vector<1x256xf32>
    %316 = arith.addf %312, %315 : vector<1x256xf32>
    %c0_124 = arith.constant 0 : index
    %c128_125 = arith.constant 128 : index
    %317 = vector.load %arg6[%c0_124, %c128_125] : memref<1x512xf32, #tpu.memory_space<vmem>>, vector<1x256xf32>
    %c0_126 = arith.constant 0 : index
    %c128_127 = arith.constant 128 : index
    %318 = vector.load %arg7[%c0_126, %c128_127] : memref<1x512xf32, #tpu.memory_space<vmem>>, vector<1x256xf32>
    %c24 = arith.constant 24 : index
    %319 = memref.load %arg1[%c24] : memref<98xf32, #tpu.memory_space<smem>>
    %320 = vector.broadcast %319 : f32 to vector<1x256xf32>
    %321 = arith.mulf %320, %317 : vector<1x256xf32>
    %322 = arith.addf %316, %321 : vector<1x256xf32>
    %c73 = arith.constant 73 : index
    %323 = memref.load %arg1[%c73] : memref<98xf32, #tpu.memory_space<smem>>
    %324 = vector.broadcast %323 : f32 to vector<1x256xf32>
    %325 = arith.mulf %324, %318 : vector<1x256xf32>
    %326 = arith.addf %322, %325 : vector<1x256xf32>
    %c0_128 = arith.constant 0 : index
    %c144 = arith.constant 144 : index
    %327 = vector.load %arg6[%c0_128, %c144] : memref<1x512xf32, #tpu.memory_space<vmem>>, vector<1x256xf32>
    %c0_129 = arith.constant 0 : index
    %c144_130 = arith.constant 144 : index
    %328 = vector.load %arg7[%c0_129, %c144_130] : memref<1x512xf32, #tpu.memory_space<vmem>>, vector<1x256xf32>
    %c31 = arith.constant 31 : index
    %329 = memref.load %arg1[%c31] : memref<98xf32, #tpu.memory_space<smem>>
    %330 = vector.broadcast %329 : f32 to vector<1x256xf32>
    %331 = arith.mulf %330, %327 : vector<1x256xf32>
    %332 = arith.addf %326, %331 : vector<1x256xf32>
    %c80_131 = arith.constant 80 : index
    %333 = memref.load %arg1[%c80_131] : memref<98xf32, #tpu.memory_space<smem>>
    %334 = vector.broadcast %333 : f32 to vector<1x256xf32>
    %335 = arith.mulf %334, %328 : vector<1x256xf32>
    %336 = arith.addf %332, %335 : vector<1x256xf32>
    %c0_132 = arith.constant 0 : index
    %c160 = arith.constant 160 : index
    %337 = vector.load %arg6[%c0_132, %c160] : memref<1x512xf32, #tpu.memory_space<vmem>>, vector<1x256xf32>
    %c0_133 = arith.constant 0 : index
    %c160_134 = arith.constant 160 : index
    %338 = vector.load %arg7[%c0_133, %c160_134] : memref<1x512xf32, #tpu.memory_space<vmem>>, vector<1x256xf32>
    %c38 = arith.constant 38 : index
    %339 = memref.load %arg1[%c38] : memref<98xf32, #tpu.memory_space<smem>>
    %340 = vector.broadcast %339 : f32 to vector<1x256xf32>
    %341 = arith.mulf %340, %337 : vector<1x256xf32>
    %342 = arith.addf %336, %341 : vector<1x256xf32>
    %c87 = arith.constant 87 : index
    %343 = memref.load %arg1[%c87] : memref<98xf32, #tpu.memory_space<smem>>
    %344 = vector.broadcast %343 : f32 to vector<1x256xf32>
    %345 = arith.mulf %344, %338 : vector<1x256xf32>
    %346 = arith.addf %342, %345 : vector<1x256xf32>
    %c0_135 = arith.constant 0 : index
    %c176 = arith.constant 176 : index
    %347 = vector.load %arg6[%c0_135, %c176] : memref<1x512xf32, #tpu.memory_space<vmem>>, vector<1x256xf32>
    %c0_136 = arith.constant 0 : index
    %c176_137 = arith.constant 176 : index
    %348 = vector.load %arg7[%c0_136, %c176_137] : memref<1x512xf32, #tpu.memory_space<vmem>>, vector<1x256xf32>
    %c45 = arith.constant 45 : index
    %349 = memref.load %arg1[%c45] : memref<98xf32, #tpu.memory_space<smem>>
    %350 = vector.broadcast %349 : f32 to vector<1x256xf32>
    %351 = arith.mulf %350, %347 : vector<1x256xf32>
    %352 = arith.addf %346, %351 : vector<1x256xf32>
    %c94_138 = arith.constant 94 : index
    %353 = memref.load %arg1[%c94_138] : memref<98xf32, #tpu.memory_space<smem>>
    %354 = vector.broadcast %353 : f32 to vector<1x256xf32>
    %355 = arith.mulf %354, %348 : vector<1x256xf32>
    %356 = arith.addf %352, %355 : vector<1x256xf32>
    %357 = arith.addf %285, %356 : vector<1x256xf32>
    %cst_139 = arith.constant 0.000000e+00 : f32
    %358 = vector.broadcast %cst_139 : f32 to vector<1x256xf32>
    %c0_140 = arith.constant 0 : index
    %c81 = arith.constant 81 : index
    %359 = vector.load %arg6[%c0_140, %c81] : memref<1x512xf32, #tpu.memory_space<vmem>>, vector<1x256xf32>
    %c0_141 = arith.constant 0 : index
    %c81_142 = arith.constant 81 : index
    %360 = vector.load %arg7[%c0_141, %c81_142] : memref<1x512xf32, #tpu.memory_space<vmem>>, vector<1x256xf32>
    %c4 = arith.constant 4 : index
    %361 = memref.load %arg1[%c4] : memref<98xf32, #tpu.memory_space<smem>>
    %362 = vector.broadcast %361 : f32 to vector<1x256xf32>
    %363 = arith.mulf %362, %359 : vector<1x256xf32>
    %364 = arith.addf %358, %363 : vector<1x256xf32>
    %c53 = arith.constant 53 : index
    %365 = memref.load %arg1[%c53] : memref<98xf32, #tpu.memory_space<smem>>
    %366 = vector.broadcast %365 : f32 to vector<1x256xf32>
    %367 = arith.mulf %366, %360 : vector<1x256xf32>
    %368 = arith.addf %364, %367 : vector<1x256xf32>
    %c0_143 = arith.constant 0 : index
    %c97 = arith.constant 97 : index
    %369 = vector.load %arg6[%c0_143, %c97] : memref<1x512xf32, #tpu.memory_space<vmem>>, vector<1x256xf32>
    %c0_144 = arith.constant 0 : index
    %c97_145 = arith.constant 97 : index
    %370 = vector.load %arg7[%c0_144, %c97_145] : memref<1x512xf32, #tpu.memory_space<vmem>>, vector<1x256xf32>
    %c11 = arith.constant 11 : index
    %371 = memref.load %arg1[%c11] : memref<98xf32, #tpu.memory_space<smem>>
    %372 = vector.broadcast %371 : f32 to vector<1x256xf32>
    %373 = arith.mulf %372, %369 : vector<1x256xf32>
    %374 = arith.addf %368, %373 : vector<1x256xf32>
    %c60 = arith.constant 60 : index
    %375 = memref.load %arg1[%c60] : memref<98xf32, #tpu.memory_space<smem>>
    %376 = vector.broadcast %375 : f32 to vector<1x256xf32>
    %377 = arith.mulf %376, %370 : vector<1x256xf32>
    %378 = arith.addf %374, %377 : vector<1x256xf32>
    %c0_146 = arith.constant 0 : index
    %c113 = arith.constant 113 : index
    %379 = vector.load %arg6[%c0_146, %c113] : memref<1x512xf32, #tpu.memory_space<vmem>>, vector<1x256xf32>
    %c0_147 = arith.constant 0 : index
    %c113_148 = arith.constant 113 : index
    %380 = vector.load %arg7[%c0_147, %c113_148] : memref<1x512xf32, #tpu.memory_space<vmem>>, vector<1x256xf32>
    %c18 = arith.constant 18 : index
    %381 = memref.load %arg1[%c18] : memref<98xf32, #tpu.memory_space<smem>>
    %382 = vector.broadcast %381 : f32 to vector<1x256xf32>
    %383 = arith.mulf %382, %379 : vector<1x256xf32>
    %384 = arith.addf %378, %383 : vector<1x256xf32>
    %c67 = arith.constant 67 : index
    %385 = memref.load %arg1[%c67] : memref<98xf32, #tpu.memory_space<smem>>
    %386 = vector.broadcast %385 : f32 to vector<1x256xf32>
    %387 = arith.mulf %386, %380 : vector<1x256xf32>
    %388 = arith.addf %384, %387 : vector<1x256xf32>
    %c0_149 = arith.constant 0 : index
    %c129 = arith.constant 129 : index
    %389 = vector.load %arg6[%c0_149, %c129] : memref<1x512xf32, #tpu.memory_space<vmem>>, vector<1x256xf32>
    %c0_150 = arith.constant 0 : index
    %c129_151 = arith.constant 129 : index
    %390 = vector.load %arg7[%c0_150, %c129_151] : memref<1x512xf32, #tpu.memory_space<vmem>>, vector<1x256xf32>
    %c25 = arith.constant 25 : index
    %391 = memref.load %arg1[%c25] : memref<98xf32, #tpu.memory_space<smem>>
    %392 = vector.broadcast %391 : f32 to vector<1x256xf32>
    %393 = arith.mulf %392, %389 : vector<1x256xf32>
    %394 = arith.addf %388, %393 : vector<1x256xf32>
    %c74 = arith.constant 74 : index
    %395 = memref.load %arg1[%c74] : memref<98xf32, #tpu.memory_space<smem>>
    %396 = vector.broadcast %395 : f32 to vector<1x256xf32>
    %397 = arith.mulf %396, %390 : vector<1x256xf32>
    %398 = arith.addf %394, %397 : vector<1x256xf32>
    %c0_152 = arith.constant 0 : index
    %c145 = arith.constant 145 : index
    %399 = vector.load %arg6[%c0_152, %c145] : memref<1x512xf32, #tpu.memory_space<vmem>>, vector<1x256xf32>
    %c0_153 = arith.constant 0 : index
    %c145_154 = arith.constant 145 : index
    %400 = vector.load %arg7[%c0_153, %c145_154] : memref<1x512xf32, #tpu.memory_space<vmem>>, vector<1x256xf32>
    %c32 = arith.constant 32 : index
    %401 = memref.load %arg1[%c32] : memref<98xf32, #tpu.memory_space<smem>>
    %402 = vector.broadcast %401 : f32 to vector<1x256xf32>
    %403 = arith.mulf %402, %399 : vector<1x256xf32>
    %404 = arith.addf %398, %403 : vector<1x256xf32>
    %c81_155 = arith.constant 81 : index
    %405 = memref.load %arg1[%c81_155] : memref<98xf32, #tpu.memory_space<smem>>
    %406 = vector.broadcast %405 : f32 to vector<1x256xf32>
    %407 = arith.mulf %406, %400 : vector<1x256xf32>
    %408 = arith.addf %404, %407 : vector<1x256xf32>
    %c0_156 = arith.constant 0 : index
    %c161 = arith.constant 161 : index
    %409 = vector.load %arg6[%c0_156, %c161] : memref<1x512xf32, #tpu.memory_space<vmem>>, vector<1x256xf32>
    %c0_157 = arith.constant 0 : index
    %c161_158 = arith.constant 161 : index
    %410 = vector.load %arg7[%c0_157, %c161_158] : memref<1x512xf32, #tpu.memory_space<vmem>>, vector<1x256xf32>
    %c39 = arith.constant 39 : index
    %411 = memref.load %arg1[%c39] : memref<98xf32, #tpu.memory_space<smem>>
    %412 = vector.broadcast %411 : f32 to vector<1x256xf32>
    %413 = arith.mulf %412, %409 : vector<1x256xf32>
    %414 = arith.addf %408, %413 : vector<1x256xf32>
    %c88 = arith.constant 88 : index
    %415 = memref.load %arg1[%c88] : memref<98xf32, #tpu.memory_space<smem>>
    %416 = vector.broadcast %415 : f32 to vector<1x256xf32>
    %417 = arith.mulf %416, %410 : vector<1x256xf32>
    %418 = arith.addf %414, %417 : vector<1x256xf32>
    %c0_159 = arith.constant 0 : index
    %c177 = arith.constant 177 : index
    %419 = vector.load %arg6[%c0_159, %c177] : memref<1x512xf32, #tpu.memory_space<vmem>>, vector<1x256xf32>
    %c0_160 = arith.constant 0 : index
    %c177_161 = arith.constant 177 : index
    %420 = vector.load %arg7[%c0_160, %c177_161] : memref<1x512xf32, #tpu.memory_space<vmem>>, vector<1x256xf32>
    %c46 = arith.constant 46 : index
    %421 = memref.load %arg1[%c46] : memref<98xf32, #tpu.memory_space<smem>>
    %422 = vector.broadcast %421 : f32 to vector<1x256xf32>
    %423 = arith.mulf %422, %419 : vector<1x256xf32>
    %424 = arith.addf %418, %423 : vector<1x256xf32>
    %c95_162 = arith.constant 95 : index
    %425 = memref.load %arg1[%c95_162] : memref<98xf32, #tpu.memory_space<smem>>
    %426 = vector.broadcast %425 : f32 to vector<1x256xf32>
    %427 = arith.mulf %426, %420 : vector<1x256xf32>
    %428 = arith.addf %424, %427 : vector<1x256xf32>
    %c1_i32 = arith.constant 1 : i32
    %429 = vector.broadcast %c1_i32 : i32 to vector<1x256xi32>
    %430 = arith.addi %32, %429 : vector<1x256xi32>
    %c0_i32_163 = arith.constant 0 : i32
    %431 = vector.broadcast %c0_i32_163 : i32 to vector<1x256xi32>
    %432 = arith.cmpi sge, %430, %431 : vector<1x256xi32>
    %c1_i32_164 = arith.constant 1 : i32
    %433 = vector.broadcast %c1_i32_164 : i32 to vector<1x256xi32>
    %434 = arith.addi %32, %433 : vector<1x256xi32>
    %c16_i32_165 = arith.constant 16 : i32
    %435 = vector.broadcast %c16_i32_165 : i32 to vector<1x256xi32>
    %436 = arith.cmpi slt, %434, %435 : vector<1x256xi32>
    %437 = arith.andi %432, %436 : vector<1x256xi1>
    %cst_166 = arith.constant 0.000000e+00 : f32
    %438 = vector.broadcast %cst_166 : f32 to vector<1x256xf32>
    %439 = arith.select %437, %428, %438 : vector<1x256xi1>, vector<1x256xf32>
    %440 = arith.addf %357, %439 : vector<1x256xf32>
    %cst_167 = arith.constant 0.000000e+00 : f32
    %441 = vector.broadcast %cst_167 : f32 to vector<1x256xf32>
    %c0_168 = arith.constant 0 : index
    %c82 = arith.constant 82 : index
    %442 = vector.load %arg6[%c0_168, %c82] : memref<1x512xf32, #tpu.memory_space<vmem>>, vector<1x256xf32>
    %c0_169 = arith.constant 0 : index
    %c82_170 = arith.constant 82 : index
    %443 = vector.load %arg7[%c0_169, %c82_170] : memref<1x512xf32, #tpu.memory_space<vmem>>, vector<1x256xf32>
    %c5 = arith.constant 5 : index
    %444 = memref.load %arg1[%c5] : memref<98xf32, #tpu.memory_space<smem>>
    %445 = vector.broadcast %444 : f32 to vector<1x256xf32>
    %446 = arith.mulf %445, %442 : vector<1x256xf32>
    %447 = arith.addf %441, %446 : vector<1x256xf32>
    %c54 = arith.constant 54 : index
    %448 = memref.load %arg1[%c54] : memref<98xf32, #tpu.memory_space<smem>>
    %449 = vector.broadcast %448 : f32 to vector<1x256xf32>
    %450 = arith.mulf %449, %443 : vector<1x256xf32>
    %451 = arith.addf %447, %450 : vector<1x256xf32>
    %c0_171 = arith.constant 0 : index
    %c98 = arith.constant 98 : index
    %452 = vector.load %arg6[%c0_171, %c98] : memref<1x512xf32, #tpu.memory_space<vmem>>, vector<1x256xf32>
    %c0_172 = arith.constant 0 : index
    %c98_173 = arith.constant 98 : index
    %453 = vector.load %arg7[%c0_172, %c98_173] : memref<1x512xf32, #tpu.memory_space<vmem>>, vector<1x256xf32>
    %c12 = arith.constant 12 : index
    %454 = memref.load %arg1[%c12] : memref<98xf32, #tpu.memory_space<smem>>
    %455 = vector.broadcast %454 : f32 to vector<1x256xf32>
    %456 = arith.mulf %455, %452 : vector<1x256xf32>
    %457 = arith.addf %451, %456 : vector<1x256xf32>
    %c61 = arith.constant 61 : index
    %458 = memref.load %arg1[%c61] : memref<98xf32, #tpu.memory_space<smem>>
    %459 = vector.broadcast %458 : f32 to vector<1x256xf32>
    %460 = arith.mulf %459, %453 : vector<1x256xf32>
    %461 = arith.addf %457, %460 : vector<1x256xf32>
    %c0_174 = arith.constant 0 : index
    %c114 = arith.constant 114 : index
    %462 = vector.load %arg6[%c0_174, %c114] : memref<1x512xf32, #tpu.memory_space<vmem>>, vector<1x256xf32>
    %c0_175 = arith.constant 0 : index
    %c114_176 = arith.constant 114 : index
    %463 = vector.load %arg7[%c0_175, %c114_176] : memref<1x512xf32, #tpu.memory_space<vmem>>, vector<1x256xf32>
    %c19 = arith.constant 19 : index
    %464 = memref.load %arg1[%c19] : memref<98xf32, #tpu.memory_space<smem>>
    %465 = vector.broadcast %464 : f32 to vector<1x256xf32>
    %466 = arith.mulf %465, %462 : vector<1x256xf32>
    %467 = arith.addf %461, %466 : vector<1x256xf32>
    %c68 = arith.constant 68 : index
    %468 = memref.load %arg1[%c68] : memref<98xf32, #tpu.memory_space<smem>>
    %469 = vector.broadcast %468 : f32 to vector<1x256xf32>
    %470 = arith.mulf %469, %463 : vector<1x256xf32>
    %471 = arith.addf %467, %470 : vector<1x256xf32>
    %c0_177 = arith.constant 0 : index
    %c130 = arith.constant 130 : index
    %472 = vector.load %arg6[%c0_177, %c130] : memref<1x512xf32, #tpu.memory_space<vmem>>, vector<1x256xf32>
    %c0_178 = arith.constant 0 : index
    %c130_179 = arith.constant 130 : index
    %473 = vector.load %arg7[%c0_178, %c130_179] : memref<1x512xf32, #tpu.memory_space<vmem>>, vector<1x256xf32>
    %c26 = arith.constant 26 : index
    %474 = memref.load %arg1[%c26] : memref<98xf32, #tpu.memory_space<smem>>
    %475 = vector.broadcast %474 : f32 to vector<1x256xf32>
    %476 = arith.mulf %475, %472 : vector<1x256xf32>
    %477 = arith.addf %471, %476 : vector<1x256xf32>
    %c75 = arith.constant 75 : index
    %478 = memref.load %arg1[%c75] : memref<98xf32, #tpu.memory_space<smem>>
    %479 = vector.broadcast %478 : f32 to vector<1x256xf32>
    %480 = arith.mulf %479, %473 : vector<1x256xf32>
    %481 = arith.addf %477, %480 : vector<1x256xf32>
    %c0_180 = arith.constant 0 : index
    %c146 = arith.constant 146 : index
    %482 = vector.load %arg6[%c0_180, %c146] : memref<1x512xf32, #tpu.memory_space<vmem>>, vector<1x256xf32>
    %c0_181 = arith.constant 0 : index
    %c146_182 = arith.constant 146 : index
    %483 = vector.load %arg7[%c0_181, %c146_182] : memref<1x512xf32, #tpu.memory_space<vmem>>, vector<1x256xf32>
    %c33 = arith.constant 33 : index
    %484 = memref.load %arg1[%c33] : memref<98xf32, #tpu.memory_space<smem>>
    %485 = vector.broadcast %484 : f32 to vector<1x256xf32>
    %486 = arith.mulf %485, %482 : vector<1x256xf32>
    %487 = arith.addf %481, %486 : vector<1x256xf32>
    %c82_183 = arith.constant 82 : index
    %488 = memref.load %arg1[%c82_183] : memref<98xf32, #tpu.memory_space<smem>>
    %489 = vector.broadcast %488 : f32 to vector<1x256xf32>
    %490 = arith.mulf %489, %483 : vector<1x256xf32>
    %491 = arith.addf %487, %490 : vector<1x256xf32>
    %c0_184 = arith.constant 0 : index
    %c162 = arith.constant 162 : index
    %492 = vector.load %arg6[%c0_184, %c162] : memref<1x512xf32, #tpu.memory_space<vmem>>, vector<1x256xf32>
    %c0_185 = arith.constant 0 : index
    %c162_186 = arith.constant 162 : index
    %493 = vector.load %arg7[%c0_185, %c162_186] : memref<1x512xf32, #tpu.memory_space<vmem>>, vector<1x256xf32>
    %c40 = arith.constant 40 : index
    %494 = memref.load %arg1[%c40] : memref<98xf32, #tpu.memory_space<smem>>
    %495 = vector.broadcast %494 : f32 to vector<1x256xf32>
    %496 = arith.mulf %495, %492 : vector<1x256xf32>
    %497 = arith.addf %491, %496 : vector<1x256xf32>
    %c89 = arith.constant 89 : index
    %498 = memref.load %arg1[%c89] : memref<98xf32, #tpu.memory_space<smem>>
    %499 = vector.broadcast %498 : f32 to vector<1x256xf32>
    %500 = arith.mulf %499, %493 : vector<1x256xf32>
    %501 = arith.addf %497, %500 : vector<1x256xf32>
    %c0_187 = arith.constant 0 : index
    %c178 = arith.constant 178 : index
    %502 = vector.load %arg6[%c0_187, %c178] : memref<1x512xf32, #tpu.memory_space<vmem>>, vector<1x256xf32>
    %c0_188 = arith.constant 0 : index
    %c178_189 = arith.constant 178 : index
    %503 = vector.load %arg7[%c0_188, %c178_189] : memref<1x512xf32, #tpu.memory_space<vmem>>, vector<1x256xf32>
    %c47 = arith.constant 47 : index
    %504 = memref.load %arg1[%c47] : memref<98xf32, #tpu.memory_space<smem>>
    %505 = vector.broadcast %504 : f32 to vector<1x256xf32>
    %506 = arith.mulf %505, %502 : vector<1x256xf32>
    %507 = arith.addf %501, %506 : vector<1x256xf32>
    %c96_190 = arith.constant 96 : index
    %508 = memref.load %arg1[%c96_190] : memref<98xf32, #tpu.memory_space<smem>>
    %509 = vector.broadcast %508 : f32 to vector<1x256xf32>
    %510 = arith.mulf %509, %503 : vector<1x256xf32>
    %511 = arith.addf %507, %510 : vector<1x256xf32>
    %c2_i32 = arith.constant 2 : i32
    %512 = vector.broadcast %c2_i32 : i32 to vector<1x256xi32>
    %513 = arith.addi %32, %512 : vector<1x256xi32>
    %c0_i32_191 = arith.constant 0 : i32
    %514 = vector.broadcast %c0_i32_191 : i32 to vector<1x256xi32>
    %515 = arith.cmpi sge, %513, %514 : vector<1x256xi32>
    %c2_i32_192 = arith.constant 2 : i32
    %516 = vector.broadcast %c2_i32_192 : i32 to vector<1x256xi32>
    %517 = arith.addi %32, %516 : vector<1x256xi32>
    %c16_i32_193 = arith.constant 16 : i32
    %518 = vector.broadcast %c16_i32_193 : i32 to vector<1x256xi32>
    %519 = arith.cmpi slt, %517, %518 : vector<1x256xi32>
    %520 = arith.andi %515, %519 : vector<1x256xi1>
    %cst_194 = arith.constant 0.000000e+00 : f32
    %521 = vector.broadcast %cst_194 : f32 to vector<1x256xf32>
    %522 = arith.select %520, %511, %521 : vector<1x256xi1>, vector<1x256xf32>
    %523 = arith.addf %440, %522 : vector<1x256xf32>
    %cst_195 = arith.constant 0.000000e+00 : f32
    %524 = vector.broadcast %cst_195 : f32 to vector<1x256xf32>
    %c0_196 = arith.constant 0 : index
    %c83 = arith.constant 83 : index
    %525 = vector.load %arg6[%c0_196, %c83] : memref<1x512xf32, #tpu.memory_space<vmem>>, vector<1x256xf32>
    %c0_197 = arith.constant 0 : index
    %c83_198 = arith.constant 83 : index
    %526 = vector.load %arg7[%c0_197, %c83_198] : memref<1x512xf32, #tpu.memory_space<vmem>>, vector<1x256xf32>
    %c6 = arith.constant 6 : index
    %527 = memref.load %arg1[%c6] : memref<98xf32, #tpu.memory_space<smem>>
    %528 = vector.broadcast %527 : f32 to vector<1x256xf32>
    %529 = arith.mulf %528, %525 : vector<1x256xf32>
    %530 = arith.addf %524, %529 : vector<1x256xf32>
    %c55 = arith.constant 55 : index
    %531 = memref.load %arg1[%c55] : memref<98xf32, #tpu.memory_space<smem>>
    %532 = vector.broadcast %531 : f32 to vector<1x256xf32>
    %533 = arith.mulf %532, %526 : vector<1x256xf32>
    %534 = arith.addf %530, %533 : vector<1x256xf32>
    %c0_199 = arith.constant 0 : index
    %c99 = arith.constant 99 : index
    %535 = vector.load %arg6[%c0_199, %c99] : memref<1x512xf32, #tpu.memory_space<vmem>>, vector<1x256xf32>
    %c0_200 = arith.constant 0 : index
    %c99_201 = arith.constant 99 : index
    %536 = vector.load %arg7[%c0_200, %c99_201] : memref<1x512xf32, #tpu.memory_space<vmem>>, vector<1x256xf32>
    %c13 = arith.constant 13 : index
    %537 = memref.load %arg1[%c13] : memref<98xf32, #tpu.memory_space<smem>>
    %538 = vector.broadcast %537 : f32 to vector<1x256xf32>
    %539 = arith.mulf %538, %535 : vector<1x256xf32>
    %540 = arith.addf %534, %539 : vector<1x256xf32>
    %c62 = arith.constant 62 : index
    %541 = memref.load %arg1[%c62] : memref<98xf32, #tpu.memory_space<smem>>
    %542 = vector.broadcast %541 : f32 to vector<1x256xf32>
    %543 = arith.mulf %542, %536 : vector<1x256xf32>
    %544 = arith.addf %540, %543 : vector<1x256xf32>
    %c0_202 = arith.constant 0 : index
    %c115 = arith.constant 115 : index
    %545 = vector.load %arg6[%c0_202, %c115] : memref<1x512xf32, #tpu.memory_space<vmem>>, vector<1x256xf32>
    %c0_203 = arith.constant 0 : index
    %c115_204 = arith.constant 115 : index
    %546 = vector.load %arg7[%c0_203, %c115_204] : memref<1x512xf32, #tpu.memory_space<vmem>>, vector<1x256xf32>
    %c20 = arith.constant 20 : index
    %547 = memref.load %arg1[%c20] : memref<98xf32, #tpu.memory_space<smem>>
    %548 = vector.broadcast %547 : f32 to vector<1x256xf32>
    %549 = arith.mulf %548, %545 : vector<1x256xf32>
    %550 = arith.addf %544, %549 : vector<1x256xf32>
    %c69 = arith.constant 69 : index
    %551 = memref.load %arg1[%c69] : memref<98xf32, #tpu.memory_space<smem>>
    %552 = vector.broadcast %551 : f32 to vector<1x256xf32>
    %553 = arith.mulf %552, %546 : vector<1x256xf32>
    %554 = arith.addf %550, %553 : vector<1x256xf32>
    %c0_205 = arith.constant 0 : index
    %c131 = arith.constant 131 : index
    %555 = vector.load %arg6[%c0_205, %c131] : memref<1x512xf32, #tpu.memory_space<vmem>>, vector<1x256xf32>
    %c0_206 = arith.constant 0 : index
    %c131_207 = arith.constant 131 : index
    %556 = vector.load %arg7[%c0_206, %c131_207] : memref<1x512xf32, #tpu.memory_space<vmem>>, vector<1x256xf32>
    %c27 = arith.constant 27 : index
    %557 = memref.load %arg1[%c27] : memref<98xf32, #tpu.memory_space<smem>>
    %558 = vector.broadcast %557 : f32 to vector<1x256xf32>
    %559 = arith.mulf %558, %555 : vector<1x256xf32>
    %560 = arith.addf %554, %559 : vector<1x256xf32>
    %c76 = arith.constant 76 : index
    %561 = memref.load %arg1[%c76] : memref<98xf32, #tpu.memory_space<smem>>
    %562 = vector.broadcast %561 : f32 to vector<1x256xf32>
    %563 = arith.mulf %562, %556 : vector<1x256xf32>
    %564 = arith.addf %560, %563 : vector<1x256xf32>
    %c0_208 = arith.constant 0 : index
    %c147 = arith.constant 147 : index
    %565 = vector.load %arg6[%c0_208, %c147] : memref<1x512xf32, #tpu.memory_space<vmem>>, vector<1x256xf32>
    %c0_209 = arith.constant 0 : index
    %c147_210 = arith.constant 147 : index
    %566 = vector.load %arg7[%c0_209, %c147_210] : memref<1x512xf32, #tpu.memory_space<vmem>>, vector<1x256xf32>
    %c34 = arith.constant 34 : index
    %567 = memref.load %arg1[%c34] : memref<98xf32, #tpu.memory_space<smem>>
    %568 = vector.broadcast %567 : f32 to vector<1x256xf32>
    %569 = arith.mulf %568, %565 : vector<1x256xf32>
    %570 = arith.addf %564, %569 : vector<1x256xf32>
    %c83_211 = arith.constant 83 : index
    %571 = memref.load %arg1[%c83_211] : memref<98xf32, #tpu.memory_space<smem>>
    %572 = vector.broadcast %571 : f32 to vector<1x256xf32>
    %573 = arith.mulf %572, %566 : vector<1x256xf32>
    %574 = arith.addf %570, %573 : vector<1x256xf32>
    %c0_212 = arith.constant 0 : index
    %c163 = arith.constant 163 : index
    %575 = vector.load %arg6[%c0_212, %c163] : memref<1x512xf32, #tpu.memory_space<vmem>>, vector<1x256xf32>
    %c0_213 = arith.constant 0 : index
    %c163_214 = arith.constant 163 : index
    %576 = vector.load %arg7[%c0_213, %c163_214] : memref<1x512xf32, #tpu.memory_space<vmem>>, vector<1x256xf32>
    %c41 = arith.constant 41 : index
    %577 = memref.load %arg1[%c41] : memref<98xf32, #tpu.memory_space<smem>>
    %578 = vector.broadcast %577 : f32 to vector<1x256xf32>
    %579 = arith.mulf %578, %575 : vector<1x256xf32>
    %580 = arith.addf %574, %579 : vector<1x256xf32>
    %c90 = arith.constant 90 : index
    %581 = memref.load %arg1[%c90] : memref<98xf32, #tpu.memory_space<smem>>
    %582 = vector.broadcast %581 : f32 to vector<1x256xf32>
    %583 = arith.mulf %582, %576 : vector<1x256xf32>
    %584 = arith.addf %580, %583 : vector<1x256xf32>
    %c0_215 = arith.constant 0 : index
    %c179 = arith.constant 179 : index
    %585 = vector.load %arg6[%c0_215, %c179] : memref<1x512xf32, #tpu.memory_space<vmem>>, vector<1x256xf32>
    %c0_216 = arith.constant 0 : index
    %c179_217 = arith.constant 179 : index
    %586 = vector.load %arg7[%c0_216, %c179_217] : memref<1x512xf32, #tpu.memory_space<vmem>>, vector<1x256xf32>
    %c48 = arith.constant 48 : index
    %587 = memref.load %arg1[%c48] : memref<98xf32, #tpu.memory_space<smem>>
    %588 = vector.broadcast %587 : f32 to vector<1x256xf32>
    %589 = arith.mulf %588, %585 : vector<1x256xf32>
    %590 = arith.addf %584, %589 : vector<1x256xf32>
    %c97_218 = arith.constant 97 : index
    %591 = memref.load %arg1[%c97_218] : memref<98xf32, #tpu.memory_space<smem>>
    %592 = vector.broadcast %591 : f32 to vector<1x256xf32>
    %593 = arith.mulf %592, %586 : vector<1x256xf32>
    %594 = arith.addf %590, %593 : vector<1x256xf32>
    %c3_i32 = arith.constant 3 : i32
    %595 = vector.broadcast %c3_i32 : i32 to vector<1x256xi32>
    %596 = arith.addi %32, %595 : vector<1x256xi32>
    %c0_i32_219 = arith.constant 0 : i32
    %597 = vector.broadcast %c0_i32_219 : i32 to vector<1x256xi32>
    %598 = arith.cmpi sge, %596, %597 : vector<1x256xi32>
    %c3_i32_220 = arith.constant 3 : i32
    %599 = vector.broadcast %c3_i32_220 : i32 to vector<1x256xi32>
    %600 = arith.addi %32, %599 : vector<1x256xi32>
    %c16_i32_221 = arith.constant 16 : i32
    %601 = vector.broadcast %c16_i32_221 : i32 to vector<1x256xi32>
    %602 = arith.cmpi slt, %600, %601 : vector<1x256xi32>
    %603 = arith.andi %598, %602 : vector<1x256xi1>
    %cst_222 = arith.constant 0.000000e+00 : f32
    %604 = vector.broadcast %cst_222 : f32 to vector<1x256xf32>
    %605 = arith.select %603, %594, %604 : vector<1x256xi1>, vector<1x256xf32>
    %606 = arith.addf %523, %605 : vector<1x256xf32>
    %cst_223 = arith.constant 0.000000e+00 : f32
    %607 = vector.broadcast %cst_223 : f32 to vector<1x256xf32>
    %608 = arith.subf %607, %606 : vector<1x256xf32>
    %609 = math.exp %608 : vector<1x256xf32>
    %cst_224 = arith.constant 1.000000e+00 : f32
    %610 = vector.broadcast %cst_224 : f32 to vector<1x256xf32>
    %611 = arith.addf %610, %609 : vector<1x256xf32>
    %cst_225 = arith.constant 1.000000e+00 : f32
    %612 = vector.broadcast %cst_225 : f32 to vector<1x256xf32>
    %613 = arith.divf %612, %611 : vector<1x256xf32>
    %c0_i32_226 = arith.constant 0 : i32
    %c0_i32_227 = arith.constant 0 : i32
    %c0_i32_228 = arith.constant 0 : i32
    %614 = tpu.memref_slice %arg4[%c0_i32_226, %c0_i32_227, %c0_i32_228] : memref<1x16x256xf32, #tpu.memory_space<vmem>> -> memref<1x16x256xf32, #tpu.memory_space<vmem>>
    %615 = tpu.memref_squeeze %614 : memref<1x16x256xf32, #tpu.memory_space<vmem>> -> memref<16x256xf32, #tpu.memory_space<vmem>>
    %c0_229 = arith.constant 0 : index
    %c0_230 = arith.constant 0 : index
    %616 = vector.load %615[%c0_229, %c0_230] : memref<16x256xf32, #tpu.memory_space<vmem>>, vector<8x256xf32>
    %617 = vector.broadcast %613 : vector<1x256xf32> to vector<8x256xf32>
    %618 = arith.mulf %616, %617 : vector<8x256xf32>
    %c0_i32_231 = arith.constant 0 : i32
    %c0_i32_232 = arith.constant 0 : i32
    %c0_i32_233 = arith.constant 0 : i32
    %619 = tpu.memref_slice %arg5[%c0_i32_231, %c0_i32_232, %c0_i32_233] : memref<1x16x256xf32, #tpu.memory_space<vmem>> -> memref<1x16x256xf32, #tpu.memory_space<vmem>>
    %620 = tpu.memref_squeeze %619 : memref<1x16x256xf32, #tpu.memory_space<vmem>> -> memref<16x256xf32, #tpu.memory_space<vmem>>
    %c0_234 = arith.constant 0 : index
    %c0_235 = arith.constant 0 : index
    %621 = vector.load %620[%c0_234, %c0_235] : memref<16x256xf32, #tpu.memory_space<vmem>>, vector<8x256xf32>
    tpu.vector_store %620[%c0_234, %c0_235], %618 {strides = array<i32>} : memref<16x256xf32, #tpu.memory_space<vmem>>, vector<8x256xf32>,
    %c0_i32_236 = arith.constant 0 : i32
    %c0_i32_237 = arith.constant 0 : i32
    %c0_i32_238 = arith.constant 0 : i32
    %622 = tpu.memref_slice %arg4[%c0_i32_236, %c0_i32_237, %c0_i32_238] : memref<1x16x256xf32, #tpu.memory_space<vmem>> -> memref<1x16x256xf32, #tpu.memory_space<vmem>>
    %623 = tpu.memref_squeeze %622 : memref<1x16x256xf32, #tpu.memory_space<vmem>> -> memref<16x256xf32, #tpu.memory_space<vmem>>
    %c8_239 = arith.constant 8 : index
    %c0_240 = arith.constant 0 : index
    %624 = vector.load %623[%c8_239, %c0_240] : memref<16x256xf32, #tpu.memory_space<vmem>>, vector<8x256xf32>
    %625 = vector.broadcast %613 : vector<1x256xf32> to vector<8x256xf32>
    %626 = arith.mulf %624, %625 : vector<8x256xf32>
    %c0_i32_241 = arith.constant 0 : i32
    %c0_i32_242 = arith.constant 0 : i32
    %c0_i32_243 = arith.constant 0 : i32
    %627 = tpu.memref_slice %arg5[%c0_i32_241, %c0_i32_242, %c0_i32_243] : memref<1x16x256xf32, #tpu.memory_space<vmem>> -> memref<1x16x256xf32, #tpu.memory_space<vmem>>
    %628 = tpu.memref_squeeze %627 : memref<1x16x256xf32, #tpu.memory_space<vmem>> -> memref<16x256xf32, #tpu.memory_space<vmem>>
    %c8_244 = arith.constant 8 : index
    %c0_245 = arith.constant 0 : index
    %629 = vector.load %628[%c8_244, %c0_245] : memref<16x256xf32, #tpu.memory_space<vmem>>, vector<8x256xf32>
    tpu.vector_store %628[%c8_244, %c0_245], %626 {strides = array<i32>} : memref<16x256xf32, #tpu.memory_space<vmem>>, vector<8x256xf32>,
    return
  }
  func.func @transform_0(%arg0: i32) -> i32 {
    %c0_i32 = arith.constant 0 : i32
    %c0_i32_0 = arith.constant 0 : i32
    return %c0_i32 : i32
  }
  func.func @transform_1(%arg0: i32) -> i32 {
    %c0_i32 = arith.constant 0 : i32
    %c0_i32_0 = arith.constant 0 : i32
    return %c0_i32 : i32
  }
  func.func @transform_2(%arg0: i32) -> (i32, i32) {
    %c0_i32 = arith.constant 0 : i32
    %c0_i32_0 = arith.constant 0 : i32
    %c0_i32_1 = arith.constant 0 : i32
    return %c0_i32, %c0_i32_0 : i32, i32
  }
  func.func @transform_3(%arg0: i32) -> (i32, i32, i32) {
    %c0_i32 = arith.constant 0 : i32
    %c0_i32_0 = arith.constant 0 : i32
    %c0_i32_1 = arith.constant 0 : i32
    return %arg0, %c0_i32, %c0_i32_0 : i32, i32, i32
  }
  func.func @transform_4(%arg0: i32) -> (i32, i32, i32) {
    %c0_i32 = arith.constant 0 : i32
    %c0_i32_0 = arith.constant 0 : i32
    %c0_i32_1 = arith.constant 0 : i32
    return %arg0, %c0_i32, %c0_i32_0 : i32, i32, i32
  }
}

</mosaic_0001>

<llo_original>
// kernel: tpu_custom_call.1
$region0: #{tpu_custom_call.1}
  #allocation0 [shape = 'u32[]', space=smem, size = 0x4, offset = 0x4, fixed_abs, tag = 'smem constant byte address 0x4 - core index']
  #allocation1 [shape = 'u32[144,128]{1,0:T(1,128)}', space=vmem, size = 0x12000, scoped, tag = 'internal scratch']
  #allocation2 [shape = 'f32[1,512]{1,0:T(1,128)}', space=vmem, size = 0x800, scoped, tag = 'scratch operand']
  #allocation3 [shape = 'f32[1,512]{1,0:T(1,128)}', space=vmem, size = 0x800, scoped, tag = 'scratch operand']
  #allocation4 [shape = 'f32[1]{0:T(128)S(6)}', space=smem, size = 0x200, scoped, tag = 'scoped memory for tpu_custom_call.1']
  %s0 = inlined_call_operand.vmem [shape: f32[98], index: 0, kind: input, shape index: {}]
  %s1 = inlined_call_operand.<no memory space> [shape: f32[1], index: 1, kind: input, shape index: {}]
  %s2 = inlined_call_operand.vmem [shape: s32[1,256], index: 2, kind: input, shape index: {}]
  %s3 = inlined_call_operand.hbm [shape: f32[2,16,256], index: 3, kind: input, shape index: {}]
  %s4 = inlined_call_operand.hbm [shape: f32[2,16,256], index: 4, kind: output, shape index: {}]
  %s5 = sld [smem:[#allocation0]]
  $region57: #{tpu_custom_call.1} parent=0
    _
  %s7 = ssub.s32 1, %s5
  %s8 = scalar_select 0, %s7, %s5
  %9 = sst [smem:[#allocation4]] %s1
  $region1: #{tpu_custom_call.1} parent=0
    #allocation5 [shape = 'u8[512]{0}', space=smem, size = 0x200, scoped, tag = 'input window, operand 0, single buffered']
    #allocation6 [shape = 's32[2]{0}', space=sflag, size = 0x8, scoped, tag = 'scoped memory for tpu_custom_call.1']
    #allocation7 [shape = 's32[2]{0}', space=sflag, size = 0x8, scoped, tag = 'scoped memory for tpu_custom_call.1']
    #allocation8 [shape = 's32[2]{0}', space=sflag, size = 0x8, scoped, tag = 'scoped memory for tpu_custom_call.1']
    #allocation9 [shape = 'u8[32768]{0}', space=vmem, size = 0x8000, scoped, tag = 'input window, operand 3']
    #allocation10 [shape = 'u8[32768]{0}', space=vmem, size = 0x8000, scoped, tag = 'output window, operand 0']
    %10 = vsyncpa [#allocation8], 0
    %11 = vsyncpa [#allocation6], 0
    %s12 = scalar_lea.sflag [#allocation6], 1
    %13 = vsyncpa %s12, 0
    %14 = vsyncpa [#allocation7], 0
    %s15 = scalar_lea.sflag [#allocation7], 1
    %16 = vsyncpa %s15, 0
    loop: start=0, step=1, limit=4
    $region2: #{tpu_custom_call.1} parent=1 // loop_pre_header
      _
    $region3: #{tpu_custom_call.1} parent=1 // loop_header
      %s18 = sphi 0, %s22
      %p19 = scmp.ge.s32.totalorder %s18, 4
      %s26 = sphi 0, %s26
      %s28 = sphi 0, %s26
      %s29 = sphi 0, %s28
      %s43 = sphi 0, %s29
      %s47 = sphi 0, %s47
      %s49 = sphi 0, %s47
      %s50 = sphi 0, %s49
      %s64 = sphi 0, %s50
      %s68 = sphi 0, %s68
      %s70 = sphi 0, %s68
      %s71 = sphi 0, %s70
      %s85 = sphi 0, %s71
      %s91 = sphi 0, %s93
      %s94 = sphi 0, %s91
      %s95 = sphi 0, %s94
      %s111 = sphi 0, %s95
      %s117 = sphi 0, %s119
      %s120 = sphi 0, %s117
      %s121 = sphi 0, %s120
      %s137 = sphi 0, %s121
    $region4: #{tpu_custom_call.1} parent=1 // loop_header_branch
      %21 = sbr.rel (%p19) target = $region8
    $region5: #{tpu_custom_call.1} parent=1 // loop_body
      %s23 = ssub.s32 %s18, 1
      %s24 = ssub.s32 %s18, 2
      %s25 = sadd.s32 %s18, 1
      %s27 = sadd.s32 %s26, 1
      %p30 = scmp.eq.s32.totalorder %s18, 1
      %p31 = scmp.ne.s32.totalorder %s26, %s28
      %p32 = scmp.eq.s32.totalorder %s18, 0
      %p33 = por %p31, %p32
      %p34 = scmp.ne.s32.totalorder %s26, %s28
      %p35 = scmp.eq.s32.totalorder %s23, 1
      %p36 = por %p34, %p35
      %p37 = scmp.ne.s32.totalorder %s28, %s29
      %p38 = scmp.eq.s32.totalorder %s23, 0
      %p39 = por %p37, %p38
      %p40 = scmp.ne.s32.totalorder %s28, %s29
      %p41 = scmp.eq.s32.totalorder %s24, 1
      %p42 = por %p40, %p41
      %p44 = scmp.ne.s32.totalorder %s29, %s43
      %p45 = scmp.eq.s32.totalorder %s24, 0
      %p46 = por %p44, %p45
      %s48 = sadd.s32 %s47, 1
      %p51 = scmp.eq.s32.totalorder %s18, 1
      %p52 = scmp.ne.s32.totalorder %s47, %s49
      %p53 = scmp.eq.s32.totalorder %s18, 0
      %p54 = por %p52, %p53
      %p55 = scmp.ne.s32.totalorder %s47, %s49
      %p56 = scmp.eq.s32.totalorder %s23, 1
      %p57 = por %p55, %p56
      %p58 = scmp.ne.s32.totalorder %s49, %s50
      %p59 = scmp.eq.s32.totalorder %s23, 0
      %p60 = por %p58, %p59
      %p61 = scmp.ne.s32.totalorder %s49, %s50
      %p62 = scmp.eq.s32.totalorder %s24, 1
      %p63 = por %p61, %p62
      %p65 = scmp.ne.s32.totalorder %s50, %s64
      %p66 = scmp.eq.s32.totalorder %s24, 0
      %p67 = por %p65, %p66
      %s69 = sadd.s32 %s68, 1
      %p72 = scmp.eq.s32.totalorder %s18, 1
      %p73 = scmp.ne.s32.totalorder %s68, %s70
      %p74 = scmp.eq.s32.totalorder %s18, 0
      %p75 = por %p73, %p74
      %p76 = scmp.ne.s32.totalorder %s68, %s70
      %p77 = scmp.eq.s32.totalorder %s23, 1
      %p78 = por %p76, %p77
      %p79 = scmp.ne.s32.totalorder %s70, %s71
      %p80 = scmp.eq.s32.totalorder %s23, 0
      %p81 = por %p79, %p80
      %p82 = scmp.ne.s32.totalorder %s70, %s71
      %p83 = scmp.eq.s32.totalorder %s24, 1
      %p84 = por %p82, %p83
      %p86 = scmp.ne.s32.totalorder %s71, %s85
      %p87 = scmp.eq.s32.totalorder %s24, 0
      %p88 = por %p86, %p87
      %s89 = ssub.s32 %s18, %s25
      %p90 = scmp.eq.s32.totalorder %s89, 0
      %s92 = sadd.s32 %s91, 1
      %s93 = scalar_select %p90, %s91, %s92
      %p96 = pneg %p90
      %p97 = scmp.eq.s32.totalorder %s18, 1
      %p98 = por %p96, %p97
      %p99 = scmp.ne.s32.totalorder %s91, %s94
      %p100 = scmp.eq.s32.totalorder %s18, 0
      %p101 = por %p99, %p100
      %p102 = scmp.ne.s32.totalorder %s91, %s94
      %p103 = scmp.eq.s32.totalorder %s23, 1
      %p104 = por %p102, %p103
      %p105 = scmp.ne.s32.totalorder %s94, %s95
      %p106 = scmp.eq.s32.totalorder %s23, 0
      %p107 = por %p105, %p106
      %p108 = scmp.ne.s32.totalorder %s94, %s95
      %p109 = scmp.eq.s32.totalorder %s24, 1
      %p110 = por %p108, %p109
      %p112 = scmp.ne.s32.totalorder %s95, %s111
      %p113 = scmp.eq.s32.totalorder %s24, 0
      %p114 = por %p112, %p113
      %s115 = ssub.s32 %s18, %s25
      %p116 = scmp.eq.s32.totalorder %s115, 0
      %s118 = sadd.s32 %s117, 1
      %s119 = scalar_select %p116, %s117, %s118
      %p122 = pneg %p116
      %p123 = scmp.eq.s32.totalorder %s18, 1
      %p124 = por %p122, %p123
      %p125 = scmp.ne.s32.totalorder %s117, %s120
      %p126 = scmp.eq.s32.totalorder %s18, 0
      %p127 = por %p125, %p126
      %p128 = scmp.ne.s32.totalorder %s117, %s120
      %p129 = scmp.eq.s32.totalorder %s23, 1
      %p130 = por %p128, %p129
      %p131 = scmp.ne.s32.totalorder %s120, %s121
      %p132 = scmp.eq.s32.totalorder %s23, 0
      %p133 = por %p131, %p132
      %p134 = scmp.ne.s32.totalorder %s120, %s121
      %p135 = scmp.eq.s32.totalorder %s24, 1
      %p136 = por %p134, %p135
      %p138 = scmp.ne.s32.totalorder %s121, %s137
      %p139 = scmp.eq.s32.totalorder %s24, 0
      %p140 = por %p138, %p139
      %p141 = scmp.le.s32.totalorder 1, %s18
      %p142 = scmp.lt.s32.totalorder %s18, 3
      %p143 = pnand %p141, %p142
      %p144 = pneg %p143
      // Predicated region
      $region9: #{tpu_custom_call.1} parent=5 // pred_check
        _
      $region10: #{tpu_custom_call.1} parent=5 // pred_check_branch
        %146 = sbr.rel (%p143) target = $region12
      $region11: #{tpu_custom_call.1} parent=5 // pred_region
        %s147 = ssub.s32 %s18, 1
        // Predicated region
        $region13: #{tpu_custom_call.1} parent=11 // pred_check
          %p148 = pneg %p39
        $region14: #{tpu_custom_call.1} parent=11 // pred_check_branch
          %150 = sbr.rel (%p148) target = $region16
        $region15: #{tpu_custom_call.1} parent=11 // pred_region
          %s152 = ssub.s32 16, 16
          %153 = vsyncadd [#allocation8], %s152
          %s155 = sshll.u32 %s0, 4
          %s156 = int_to_ptr.vmem [resolvable:$true] %s155
          %158 = dma.vmem_to_smem %s156, 16, [#allocation5], [#allocation8]
        $region16: #{tpu_custom_call.1} parent=11 // pred_fallthru
          _
        // Predicated region
        $region17: #{tpu_custom_call.1} parent=11 // pred_check
          %p159 = pneg %p60
        $region18: #{tpu_custom_call.1} parent=11 // pred_check_branch
          %161 = sbr.rel (%p159) target = $region20
        $region19: #{tpu_custom_call.1} parent=11 // pred_region
          _
        $region20: #{tpu_custom_call.1} parent=11 // pred_fallthru
          _
        // Predicated region
        $region21: #{tpu_custom_call.1} parent=11 // pred_check
          %p162 = pneg %p81
        $region22: #{tpu_custom_call.1} parent=11 // pred_check_branch
          %164 = sbr.rel (%p162) target = $region24
        $region23: #{tpu_custom_call.1} parent=11 // pred_region
          _
        $region24: #{tpu_custom_call.1} parent=11 // pred_fallthru
          _
      $region12: #{tpu_custom_call.1} parent=5 // pred_fallthru
        _
      %p165 = scmp.lt.s32.totalorder %s18, 2
      // Predicated region
      $region25: #{tpu_custom_call.1} parent=5 // pred_check
        %p166 = pneg %p165
      $region26: #{tpu_custom_call.1} parent=5 // pred_check_branch
        %168 = sbr.rel (%p166) target = $region28
      $region27: #{tpu_custom_call.1} parent=5 // pred_region
        // Predicated region
        $region29: #{tpu_custom_call.1} parent=27 // pred_check
          %p169 = pneg %p101
        $region30: #{tpu_custom_call.1} parent=27 // pred_check_branch
          %171 = sbr.rel (%p169) target = $region32
        $region31: #{tpu_custom_call.1} parent=27 // pred_region
          %s172 = sand.u32 %s91, 1
          %s173 = scalar_lea.sflag [#allocation6], %s172
          %s174 = sand.u32 %s91, 1
          %s175 = smul.addr %s174, 32
          %s176 = scalar_lea.vmem [#allocation9], %s175
          %s178 = ssub.s32 512, 512
          %179 = vsyncadd %s173, %s178
          %s180 = smul.addr %s18, 4
          %s181 = smul.addr %s180, 128
          %s182 = scalar_lea.hbm %s3, %s181
          %s183 = sshll.u32 %s176, 4
          %s184 = int_to_ptr.vmem [resolvable:$true] %s183
          %189 = dma.hbm_to_vmem [thread:$0]  %s182, 512, %s184, %s173, 256, 256, 16
        $region32: #{tpu_custom_call.1} parent=27 // pred_fallthru
          _
      $region28: #{tpu_custom_call.1} parent=5 // pred_fallthru
        _
      %p190 = scmp.le.s32.totalorder 1, %s18
      %p191 = scmp.lt.s32.totalorder %s18, 3
      %p192 = pnand %p190, %p191
      %p193 = pneg %p192
      // Predicated region
      $region33: #{tpu_custom_call.1} parent=5 // pred_check
        _
      $region34: #{tpu_custom_call.1} parent=5 // pred_check_branch
        %195 = sbr.rel (%p192) target = $region36
      $region35: #{tpu_custom_call.1} parent=5 // pred_region
        %s196 = ssub.s32 %s18, 1
        // Predicated region
        $region37: #{tpu_custom_call.1} parent=35 // pred_check
          %p197 = pneg %p39
        $region38: #{tpu_custom_call.1} parent=35 // pred_check_branch
          %199 = sbr.rel (%p197) target = $region40
        $region39: #{tpu_custom_call.1} parent=35 // pred_region
          %200 = dma.done [#allocation8], 16
        $region40: #{tpu_custom_call.1} parent=35 // pred_fallthru
          _
        %s201 = sand.u32 %s94, 1
        %s202 = scalar_lea.sflag [#allocation6], %s201
        %s203 = sand.u32 %s94, 1
        %s204 = smul.addr %s203, 32
        %s205 = scalar_lea.vmem [#allocation9], %s204
        // Predicated region
        $region41: #{tpu_custom_call.1} parent=35 // pred_check
          %p206 = pneg %p107
        $region42: #{tpu_custom_call.1} parent=35 // pred_check_branch
          %208 = sbr.rel (%p206) target = $region44
        $region43: #{tpu_custom_call.1} parent=35 // pred_region
          %209 = dma.done %s202, 512
        $region44: #{tpu_custom_call.1} parent=35 // pred_fallthru
          _
        %210 = sfence
        %p211 = pneg %p39
        %p212 = pneg %p36
        %p213 = pneg %p60
        %p214 = pneg %p57
        %p215 = pneg %p81
        %p216 = pneg %p78
        %s217 = sand.u32 %s94, 1
        %s218 = scalar_lea.sflag [#allocation6], %s217
        %s219 = sand.u32 %s94, 1
        %s220 = smul.addr %s219, 32
        %s221 = scalar_lea.vmem [#allocation9], %s220
        %p222 = pneg %p107
        %p223 = pneg %p104
        %p224 = pneg %p133
        %p225 = pneg %p130
        %s226 = sand.u32 %s120, 1
        %s227 = scalar_lea.sflag [#allocation7], %s226
        %s228 = sand.u32 %s120, 1
        %s229 = smul.addr %s228, 32
        %s230 = scalar_lea.vmem [#allocation10], %s229
        %v231 = vlaneseq
        %vm232 = vcmp.ge.s32.totalorder %v231, 0
        %vm233 = vcmp.lt.s32.totalorder %v231, 128
        %vm234 = vmand %vm232, %vm233
        %235 = vst.msk [vmem:[#allocation2] sm:$0x1] %vm234, 0.0
        %236 = vst.msk [vmem:[#allocation3] sm:$0x1] %vm234, 0.0
        %237 = vst.msk [vmem:[#allocation2 + $0x3] sm:$0x1] %vm234, 0.0
        %238 = vst.msk [vmem:[#allocation3 + $0x3] sm:$0x1] %vm234, 0.0
        %v239 = vld [vmem:[%s205] sm:$0xff]
        %v240 = vld [vmem:[%s205 + $0x8] sm:$0xff]
        %v241 = vrot.slane %v239, 4
        %v242 = vadd.f32 %v239, %v241
        %v243 = vrot.slane %v242, 2
        %v244 = vadd.f32 %v242, %v243
        %v245 = vrot.slane %v244, 1
        %v246 = vadd.f32 %v244, %v245
        %v247 = vrot.slane %v240, 4
        %v248 = vadd.f32 %v240, %v247
        %v249 = vrot.slane %v248, 2
        %v250 = vadd.f32 %v248, %v249
        %v251 = vrot.slane %v250, 1
        %v252 = vadd.f32 %v250, %v251
        %v253 = vadd.f32 %v246, 0.0
        %v254 = vadd.f32 %v252, 0.0
        %v255 = vrot.slane %v239, 4
        %v256 = vmax.f32 %v239, %v255
        %v257 = vrot.slane %v256, 2
        %v258 = vmax.f32 %v256, %v257
        %v259 = vrot.slane %v258, 1
        %v260 = vmax.f32 %v258, %v259
        %v261 = vrot.slane %v240, 4
        %v262 = vmax.f32 %v240, %v261
        %v263 = vrot.slane %v262, 2
        %v264 = vmax.f32 %v262, %v263
        %v265 = vrot.slane %v264, 1
        %v266 = vmax.f32 %v264, %v265
        %v267 = vld [vmem:[%s205 + $0x10] sm:$0xff]
        %v268 = vld [vmem:[%s205 + $0x18] sm:$0xff]
        %v269 = vrot.slane %v267, 4
        %v270 = vadd.f32 %v267, %v269
        %v271 = vrot.slane %v270, 2
        %v272 = vadd.f32 %v270, %v271
        %v273 = vrot.slane %v272, 1
        %v274 = vadd.f32 %v272, %v273
        %v275 = vrot.slane %v268, 4
        %v276 = vadd.f32 %v268, %v275
        %v277 = vrot.slane %v276, 2
        %v278 = vadd.f32 %v276, %v277
        %v279 = vrot.slane %v278, 1
        %v280 = vadd.f32 %v278, %v279
        %v281 = vadd.f32 %v253, %v274
        %v282 = vadd.f32 %v254, %v280
        %v283 = vrot.slane %v267, 4
        %v284 = vmax.f32 %v267, %v283
        %v285 = vrot.slane %v284, 2
        %v286 = vmax.f32 %v284, %v285
        %v287 = vrot.slane %v286, 1
        %v288 = vmax.f32 %v286, %v287
        %v289 = vrot.slane %v268, 4
        %v290 = vmax.f32 %v268, %v289
        %v291 = vrot.slane %v290, 2
        %v292 = vmax.f32 %v290, %v291
        %v293 = vrot.slane %v292, 1
        %v294 = vmax.f32 %v292, %v293
        %v295 = vmax.f32 %v260, %v288
        %v296 = vmax.f32 %v266, %v294
        %v297 = vmul.f32 %v281, 0.0625
        %v298 = vmul.f32 %v282, 0.0625
        %v301 = vcombine.low %v297, %v298
        %v303 = vunpack.c.l.s4 1966171168
        %v304 = vunpack.c.0.s8 %v303
        %v305 = vlaneseq
        %v306 = vshrl.u32 %v305, 7
        %v307 = vsub.s32 %v304, %v306
        %v308 = vrot.slane %v301, %v307
        %v310 = vunpack.c.l.s4 1966171168
        %v311 = vunpack.c.0.s8 %v310
        %v312 = vlaneseq
        %v313 = vshrl.u32 %v312, 7
        %v314 = vsub.s32 %v311, %v313
        %v315 = vrot.slane %v308, %v314
        %vm317 = vcmp.lt.s32.totalorder %v231, 256
        %vm318 = vmand %vm232, %vm317
        %319 = vst.msk [vmem:[#allocation2 + $0x1] sm:$0x3] %vm318, %v315
        %v322 = vcombine.low %v295, %v296
        %v324 = vunpack.c.l.s4 1966171168
        %v325 = vunpack.c.0.s8 %v324
        %v326 = vlaneseq
        %v327 = vshrl.u32 %v326, 7
        %v328 = vsub.s32 %v325, %v327
        %v329 = vrot.slane %v322, %v328
        %v331 = vunpack.c.l.s4 1966171168
        %v332 = vunpack.c.0.s8 %v331
        %v333 = vlaneseq
        %v334 = vshrl.u32 %v333, 7
        %v335 = vsub.s32 %v332, %v334
        %v336 = vrot.slane %v329, %v335
        %338 = vst.msk [vmem:[#allocation3 + $0x1] sm:$0x3] %vm318, %v336
        %v339 = vld [vmem:[%s2] sm:$0x3]
        %s340 = sld [smem:[#allocation4]]
        %v341 = vstv %s340
        %v342 = vadd.f32 %v341, 0.0
        %v343 = vld [vmem:[#allocation2] sm:$0x7]
        %v344 = vld [vmem:[#allocation3] sm:$0x7]
        %s345 = sld [smem:[#allocation5]]
        %v346 = vstv %s345
        %v347 = vmul.f32 %v346, %v343
        %v348 = vadd.f32 %v347, 0.0
        %s349 = sld [smem:[#allocation5 + $0x31]]
        %v350 = vstv %s349
        %v351 = vmul.f32 %v350, %v344
        %v352 = vadd.f32 %v348, %v351
        %s353 = sld [smem:[#allocation5 + $0x7]]
        %v354 = vstv %s353
        %v355 = vmul.f32 %v354, %v343
        %357 = vrot.lane.b32.xlu0 %v355, 112
        %v358 = vpop.permute.xlu0 %357
        %v359 = vrot.slane %v358, 1
        %vm360 = vcmask 916480
        %v361 = vsel %vm360, %v358, %v359
        %v363 = vadd.f32 %v352, %v361
        %s364 = sld [smem:[#allocation5 + $0x38]]
        %v365 = vstv %s364
        %v366 = vmul.f32 %v365, %v344
        %368 = vrot.lane.b32.xlu0 %v366, 112
        %v369 = vpop.permute.xlu0 %368
        %v370 = vrot.slane %v369, 1
        %v371 = vsel %vm360, %v369, %v370
        %v373 = vadd.f32 %v363, %v371
        %s374 = sld [smem:[#allocation5 + $0xe]]
        %v375 = vstv %s374
        %v376 = vmul.f32 %v375, %v343
        %378 = vrot.lane.b32.xlu0 %v376, 96
        %v379 = vpop.permute.xlu0 %378
        %v380 = vrot.slane %v379, 1
        %vm381 = vcmask 785408
        %v382 = vsel %vm381, %v379, %v380
        %v384 = vadd.f32 %v373, %v382
        %s385 = sld [smem:[#allocation5 + $0x3f]]
        %v386 = vstv %s385
        %v387 = vmul.f32 %v386, %v344
        %389 = vrot.lane.b32.xlu0 %v387, 96
        %v390 = vpop.permute.xlu0 %389
        %v391 = vrot.slane %v390, 1
        %v392 = vsel %vm381, %v390, %v391
        %v394 = vadd.f32 %v384, %v392
        %s395 = sld [smem:[#allocation5 + $0x15]]
        %v396 = vstv %s395
        %v397 = vmul.f32 %v396, %v343
        %399 = vrot.lane.b32.xlu0 %v397, 80
        %v400 = vpop.permute.xlu0 %399
        %v401 = vrot.slane %v400, 1
        %vm402 = vcmask 654336
        %v403 = vsel %vm402, %v400, %v401
        %v405 = vadd.f32 %v394, %v403
        %s406 = sld [smem:[#allocation5 + $0x46]]
        %v407 = vstv %s406
        %v408 = vmul.f32 %v407, %v344
        %410 = vrot.lane.b32.xlu0 %v408, 80
        %v411 = vpop.permute.xlu0 %410
        %v412 = vrot.slane %v411, 1
        %v413 = vsel %vm402, %v411, %v412
        %v415 = vadd.f32 %v405, %v413
        %v416 = vld [vmem:[#allocation2 + $0x1] sm:$0x7]
        %v417 = vld [vmem:[#allocation3 + $0x1] sm:$0x7]
        %s418 = sld [smem:[#allocation5 + $0x1c]]
        %v419 = vstv %s418
        %v420 = vmul.f32 %v419, %v416
        %422 = vrot.lane.b32.xlu0 %v420, 64
        %v423 = vpop.permute.xlu0 %422
        %v424 = vrot.slane %v423, 7
        %vm425 = vcmask 523264
        %v426 = vsel %vm425, %v424, %v423
        %v428 = vadd.f32 %v415, %v426
        %s429 = sld [smem:[#allocation5 + $0x4d]]
        %v430 = vstv %s429
        %v431 = vmul.f32 %v430, %v417
        %433 = vrot.lane.b32.xlu0 %v431, 64
        %v434 = vpop.permute.xlu0 %433
        %v435 = vrot.slane %v434, 7
        %v436 = vsel %vm425, %v435, %v434
        %v438 = vadd.f32 %v428, %v436
        %s439 = sld [smem:[#allocation5 + $0x23]]
        %v440 = vstv %s439
        %v441 = vmul.f32 %v440, %v416
        %443 = vrot.lane.b32.xlu0 %v441, 48
        %v444 = vpop.permute.xlu0 %443
        %v445 = vrot.slane %v444, 7
        %vm446 = vcmask 392192
        %v447 = vsel %vm446, %v445, %v444
        %v449 = vadd.f32 %v438, %v447
        %s450 = sld [smem:[#allocation5 + $0x54]]
        %v451 = vstv %s450
        %v452 = vmul.f32 %v451, %v417
        %454 = vrot.lane.b32.xlu0 %v452, 48
        %v455 = vpop.permute.xlu0 %454
        %v456 = vrot.slane %v455, 7
        %v457 = vsel %vm446, %v456, %v455
        %v459 = vadd.f32 %v449, %v457
        %s460 = sld [smem:[#allocation5 + $0x2a]]
        %v461 = vstv %s460
        %v462 = vmul.f32 %v461, %v416
        %464 = vrot.lane.b32.xlu0 %v462, 32
        %v465 = vpop.permute.xlu0 %464
        %v466 = vrot.slane %v465, 7
        %vm467 = vcmask 261120
        %v468 = vsel %vm467, %v466, %v465
        %v470 = vadd.f32 %v459, %v468
        %s471 = sld [smem:[#allocation5 + $0x5b]]
        %v472 = vstv %s471
        %v473 = vmul.f32 %v472, %v417
        %475 = vrot.lane.b32.xlu0 %v473, 32
        %v476 = vpop.permute.xlu0 %475
        %v477 = vrot.slane %v476, 7
        %v478 = vsel %vm467, %v477, %v476
        %v480 = vadd.f32 %v470, %v478
        %v481 = vadd.s32 %v339, 4294967293
        %vm482 = vcmp.ge.s32.totalorder %v481, 0
        %vm483 = vcmp.lt.s32.totalorder %v481, 16
        %vm484 = vmand %vm482, %vm483
        %486 = vrot.lane.b32.xlu0 %v480, 51
        %v487 = vpop.permute.xlu0 %486
        %v488 = vrot.slane %v487, 1
        %vm489 = vcmask 416768
        %v490 = vsel %vm489, %v487, %v488
        %v492 = vsel %vm484, %v490, 0.0
        %v493 = vadd.f32 %v342, %v492
        %s494 = sld [smem:[#allocation5 + $0x1]]
        %v495 = vstv %s494
        %v496 = vmul.f32 %v495, %v343
        %v497 = vadd.f32 %v496, 0.0
        %s498 = sld [smem:[#allocation5 + $0x32]]
        %v499 = vstv %s498
        %v500 = vmul.f32 %v499, %v344
        %v501 = vadd.f32 %v497, %v500
        %s502 = sld [smem:[#allocation5 + $0x8]]
        %v503 = vstv %s502
        %v504 = vmul.f32 %v503, %v343
        %506 = vrot.lane.b32.xlu0 %v504, 112
        %v507 = vpop.permute.xlu0 %506
        %v508 = vrot.slane %v507, 1
        %v509 = vsel %vm360, %v507, %v508
        %v511 = vadd.f32 %v501, %v509
        %s512 = sld [smem:[#allocation5 + $0x39]]
        %v513 = vstv %s512
        %v514 = vmul.f32 %v513, %v344
        %516 = vrot.lane.b32.xlu0 %v514, 112
        %v517 = vpop.permute.xlu0 %516
        %v518 = vrot.slane %v517, 1
        %v519 = vsel %vm360, %v517, %v518
        %v521 = vadd.f32 %v511, %v519
        %s522 = sld [smem:[#allocation5 + $0xf]]
        %v523 = vstv %s522
        %v524 = vmul.f32 %v523, %v343
        %526 = vrot.lane.b32.xlu0 %v524, 96
        %v527 = vpop.permute.xlu0 %526
        %v528 = vrot.slane %v527, 1
        %v529 = vsel %vm381, %v527, %v528
        %v531 = vadd.f32 %v521, %v529
        %s532 = sld [smem:[#allocation5 + $0x40]]
        %v533 = vstv %s532
        %v534 = vmul.f32 %v533, %v344
        %536 = vrot.lane.b32.xlu0 %v534, 96
        %v537 = vpop.permute.xlu0 %536
        %v538 = vrot.slane %v537, 1
        %v539 = vsel %vm381, %v537, %v538
        %v541 = vadd.f32 %v531, %v539
        %s542 = sld [smem:[#allocation5 + $0x16]]
        %v543 = vstv %s542
        %v544 = vmul.f32 %v543, %v343
        %546 = vrot.lane.b32.xlu0 %v544, 80
        %v547 = vpop.permute.xlu0 %546
        %v548 = vrot.slane %v547, 1
        %v549 = vsel %vm402, %v547, %v548
        %v551 = vadd.f32 %v541, %v549
        %s552 = sld [smem:[#allocation5 + $0x47]]
        %v553 = vstv %s552
        %v554 = vmul.f32 %v553, %v344
        %556 = vrot.lane.b32.xlu0 %v554, 80
        %v557 = vpop.permute.xlu0 %556
        %v558 = vrot.slane %v557, 1
        %v559 = vsel %vm402, %v557, %v558
        %v561 = vadd.f32 %v551, %v559
        %s562 = sld [smem:[#allocation5 + $0x1d]]
        %v563 = vstv %s562
        %v564 = vmul.f32 %v563, %v416
        %566 = vrot.lane.b32.xlu0 %v564, 64
        %v567 = vpop.permute.xlu0 %566
        %v568 = vrot.slane %v567, 7
        %v569 = vsel %vm425, %v568, %v567
        %v571 = vadd.f32 %v561, %v569
        %s572 = sld [smem:[#allocation5 + $0x4e]]
        %v573 = vstv %s572
        %v574 = vmul.f32 %v573, %v417
        %576 = vrot.lane.b32.xlu0 %v574, 64
        %v577 = vpop.permute.xlu0 %576
        %v578 = vrot.slane %v577, 7
        %v579 = vsel %vm425, %v578, %v577
        %v581 = vadd.f32 %v571, %v579
        %s582 = sld [smem:[#allocation5 + $0x24]]
        %v583 = vstv %s582
        %v584 = vmul.f32 %v583, %v416
        %586 = vrot.lane.b32.xlu0 %v584, 48
        %v587 = vpop.permute.xlu0 %586
        %v588 = vrot.slane %v587, 7
        %v589 = vsel %vm446, %v588, %v587
        %v591 = vadd.f32 %v581, %v589
        %s592 = sld [smem:[#allocation5 + $0x55]]
        %v593 = vstv %s592
        %v594 = vmul.f32 %v593, %v417
        %596 = vrot.lane.b32.xlu0 %v594, 48
        %v597 = vpop.permute.xlu0 %596
        %v598 = vrot.slane %v597, 7
        %v599 = vsel %vm446, %v598, %v597
        %v601 = vadd.f32 %v591, %v599
        %s602 = sld [smem:[#allocation5 + $0x2b]]
        %v603 = vstv %s602
        %v604 = vmul.f32 %v603, %v416
        %606 = vrot.lane.b32.xlu0 %v604, 32
        %v607 = vpop.permute.xlu0 %606
        %v608 = vrot.slane %v607, 7
        %v609 = vsel %vm467, %v608, %v607
        %v611 = vadd.f32 %v601, %v609
        %s612 = sld [smem:[#allocation5 + $0x5c]]
        %v613 = vstv %s612
        %v614 = vmul.f32 %v613, %v417
        %616 = vrot.lane.b32.xlu0 %v614, 32
        %v617 = vpop.permute.xlu0 %616
        %v618 = vrot.slane %v617, 7
        %v619 = vsel %vm467, %v618, %v617
        %v621 = vadd.f32 %v611, %v619
        %v622 = vadd.s32 %v339, 4294967294
        %vm623 = vcmp.ge.s32.totalorder %v622, 0
        %vm624 = vcmp.lt.s32.totalorder %v622, 16
        %vm625 = vmand %vm623, %vm624
        %627 = vrot.lane.b32.xlu0 %v621, 50
        %v628 = vpop.permute.xlu0 %627
        %v629 = vrot.slane %v628, 1
        %vm630 = vcmask 408576
        %v631 = vsel %vm630, %v628, %v629
        %v633 = vsel %vm625, %v631, 0.0
        %v634 = vadd.f32 %v493, %v633
        %s635 = sld [smem:[#allocation5 + $0x2]]
        %v636 = vstv %s635
        %v637 = vmul.f32 %v636, %v343
        %v638 = vadd.f32 %v637, 0.0
        %s639 = sld [smem:[#allocation5 + $0x33]]
        %v640 = vstv %s639
        %v641 = vmul.f32 %v640, %v344
        %v642 = vadd.f32 %v638, %v641
        %s643 = sld [smem:[#allocation5 + $0x9]]
        %v644 = vstv %s643
        %v645 = vmul.f32 %v644, %v343
        %647 = vrot.lane.b32.xlu0 %v645, 112
        %v648 = vpop.permute.xlu0 %647
        %v649 = vrot.slane %v648, 1
        %v650 = vsel %vm360, %v648, %v649
        %v652 = vadd.f32 %v642, %v650
        %s653 = sld [smem:[#allocation5 + $0x3a]]
        %v654 = vstv %s653
        %v655 = vmul.f32 %v654, %v344
        %657 = vrot.lane.b32.xlu0 %v655, 112
        %v658 = vpop.permute.xlu0 %657
        %v659 = vrot.slane %v658, 1
        %v660 = vsel %vm360, %v658, %v659
        %v662 = vadd.f32 %v652, %v660
        %s663 = sld [smem:[#allocation5 + $0x10]]
        %v664 = vstv %s663
        %v665 = vmul.f32 %v664, %v343
        %667 = vrot.lane.b32.xlu0 %v665, 96
        %v668 = vpop.permute.xlu0 %667
        %v669 = vrot.slane %v668, 1
        %v670 = vsel %vm381, %v668, %v669
        %v672 = vadd.f32 %v662, %v670
        %s673 = sld [smem:[#allocation5 + $0x41]]
        %v674 = vstv %s673
        %v675 = vmul.f32 %v674, %v344
        %677 = vrot.lane.b32.xlu0 %v675, 96
        %v678 = vpop.permute.xlu0 %677
        %v679 = vrot.slane %v678, 1
        %v680 = vsel %vm381, %v678, %v679
        %v682 = vadd.f32 %v672, %v680
        %s683 = sld [smem:[#allocation5 + $0x17]]
        %v684 = vstv %s683
        %v685 = vmul.f32 %v684, %v343
        %687 = vrot.lane.b32.xlu0 %v685, 80
        %v688 = vpop.permute.xlu0 %687
        %v689 = vrot.slane %v688, 1
        %v690 = vsel %vm402, %v688, %v689
        %v692 = vadd.f32 %v682, %v690
        %s693 = sld [smem:[#allocation5 + $0x48]]
        %v694 = vstv %s693
        %v695 = vmul.f32 %v694, %v344
        %697 = vrot.lane.b32.xlu0 %v695, 80
        %v698 = vpop.permute.xlu0 %697
        %v699 = vrot.slane %v698, 1
        %v700 = vsel %vm402, %v698, %v699
        %v702 = vadd.f32 %v692, %v700
        %s703 = sld [smem:[#allocation5 + $0x1e]]
        %v704 = vstv %s703
        %v705 = vmul.f32 %v704, %v416
        %707 = vrot.lane.b32.xlu0 %v705, 64
        %v708 = vpop.permute.xlu0 %707
        %v709 = vrot.slane %v708, 7
        %v710 = vsel %vm425, %v709, %v708
        %v712 = vadd.f32 %v702, %v710
        %s713 = sld [smem:[#allocation5 + $0x4f]]
        %v714 = vstv %s713
        %v715 = vmul.f32 %v714, %v417
        %717 = vrot.lane.b32.xlu0 %v715, 64
        %v718 = vpop.permute.xlu0 %717
        %v719 = vrot.slane %v718, 7
        %v720 = vsel %vm425, %v719, %v718
        %v722 = vadd.f32 %v712, %v720
        %s723 = sld [smem:[#allocation5 + $0x25]]
        %v724 = vstv %s723
        %v725 = vmul.f32 %v724, %v416
        %727 = vrot.lane.b32.xlu0 %v725, 48
        %v728 = vpop.permute.xlu0 %727
        %v729 = vrot.slane %v728, 7
        %v730 = vsel %vm446, %v729, %v728
        %v732 = vadd.f32 %v722, %v730
        %s733 = sld [smem:[#allocation5 + $0x56]]
        %v734 = vstv %s733
        %v735 = vmul.f32 %v734, %v417
        %737 = vrot.lane.b32.xlu0 %v735, 48
        %v738 = vpop.permute.xlu0 %737
        %v739 = vrot.slane %v738, 7
        %v740 = vsel %vm446, %v739, %v738
        %v742 = vadd.f32 %v732, %v740
        %s743 = sld [smem:[#allocation5 + $0x2c]]
        %v744 = vstv %s743
        %v745 = vmul.f32 %v744, %v416
        %747 = vrot.lane.b32.xlu0 %v745, 32
        %v748 = vpop.permute.xlu0 %747
        %v749 = vrot.slane %v748, 7
        %v750 = vsel %vm467, %v749, %v748
        %v752 = vadd.f32 %v742, %v750
        %s753 = sld [smem:[#allocation5 + $0x5d]]
        %v754 = vstv %s753
        %v755 = vmul.f32 %v754, %v417
        %757 = vrot.lane.b32.xlu0 %v755, 32
        %v758 = vpop.permute.xlu0 %757
        %v759 = vrot.slane %v758, 7
        %v760 = vsel %vm467, %v759, %v758
        %v762 = vadd.f32 %v752, %v760
        %v763 = vadd.s32 %v339, 4294967295
        %vm764 = vcmp.ge.s32.totalorder %v763, 0
        %vm765 = vcmp.lt.s32.totalorder %v763, 16
        %vm766 = vmand %vm764, %vm765
        %768 = vrot.lane.b32.xlu0 %v762, 49
        %v769 = vpop.permute.xlu0 %768
        %v770 = vrot.slane %v769, 1
        %vm771 = vcmask 400384
        %v772 = vsel %vm771, %v769, %v770
        %v774 = vsel %vm766, %v772, 0.0
        %v775 = vadd.f32 %v634, %v774
        %s776 = sld [smem:[#allocation5 + $0x3]]
        %v777 = vstv %s776
        %v778 = vmul.f32 %v777, %v343
        %v779 = vadd.f32 %v778, 0.0
        %s780 = sld [smem:[#allocation5 + $0x34]]
        %v781 = vstv %s780
        %v782 = vmul.f32 %v781, %v344
        %v783 = vadd.f32 %v779, %v782
        %s784 = sld [smem:[#allocation5 + $0xa]]
        %v785 = vstv %s784
        %v786 = vmul.f32 %v785, %v343
        %788 = vrot.lane.b32.xlu0 %v786, 112
        %v789 = vpop.permute.xlu0 %788
        %v790 = vrot.slane %v789, 1
        %v791 = vsel %vm360, %v789, %v790
        %v793 = vadd.f32 %v783, %v791
        %s794 = sld [smem:[#allocation5 + $0x3b]]
        %v795 = vstv %s794
        %v796 = vmul.f32 %v795, %v344
        %798 = vrot.lane.b32.xlu0 %v796, 112
        %v799 = vpop.permute.xlu0 %798
        %v800 = vrot.slane %v799, 1
        %v801 = vsel %vm360, %v799, %v800
        %v803 = vadd.f32 %v793, %v801
        %s804 = sld [smem:[#allocation5 + $0x11]]
        %v805 = vstv %s804
        %v806 = vmul.f32 %v805, %v343
        %808 = vrot.lane.b32.xlu0 %v806, 96
        %v809 = vpop.permute.xlu0 %808
        %v810 = vrot.slane %v809, 1
        %v811 = vsel %vm381, %v809, %v810
        %v813 = vadd.f32 %v803, %v811
        %s814 = sld [smem:[#allocation5 + $0x42]]
        %v815 = vstv %s814
        %v816 = vmul.f32 %v815, %v344
        %818 = vrot.lane.b32.xlu0 %v816, 96
        %v819 = vpop.permute.xlu0 %818
        %v820 = vrot.slane %v819, 1
        %v821 = vsel %vm381, %v819, %v820
        %v823 = vadd.f32 %v813, %v821
        %v824 = vld [vmem:[#allocation2 + $0x1] sm:$0x3]
        %v825 = vld [vmem:[#allocation3 + $0x1] sm:$0x3]
        %s826 = sld [smem:[#allocation5 + $0x18]]
        %v827 = vstv %s826
        %v828 = vmul.f32 %v827, %v824
        %830 = vrot.lane.b32.xlu0 %v828, 80
        %v831 = vpop.permute.xlu0 %830
        %v832 = vrot.slane %v831, 7
        %v833 = vsel %vm402, %v832, %v831
        %v835 = vadd.f32 %v823, %v833
        %s836 = sld [smem:[#allocation5 + $0x49]]
        %v837 = vstv %s836
        %v838 = vmul.f32 %v837, %v825
        %840 = vrot.lane.b32.xlu0 %v838, 80
        %v841 = vpop.permute.xlu0 %840
        %v842 = vrot.slane %v841, 7
        %v843 = vsel %vm402, %v842, %v841
        %v845 = vadd.f32 %v835, %v843
        %s846 = sld [smem:[#allocation5 + $0x1f]]
        %v847 = vstv %s846
        %v848 = vmul.f32 %v847, %v416
        %850 = vrot.lane.b32.xlu0 %v848, 64
        %v851 = vpop.permute.xlu0 %850
        %v852 = vrot.slane %v851, 7
        %v853 = vsel %vm425, %v852, %v851
        %v855 = vadd.f32 %v845, %v853
        %s856 = sld [smem:[#allocation5 + $0x50]]
        %v857 = vstv %s856
        %v858 = vmul.f32 %v857, %v417
        %860 = vrot.lane.b32.xlu0 %v858, 64
        %v861 = vpop.permute.xlu0 %860
        %v862 = vrot.slane %v861, 7
        %v863 = vsel %vm425, %v862, %v861
        %v865 = vadd.f32 %v855, %v863
        %s866 = sld [smem:[#allocation5 + $0x26]]
        %v867 = vstv %s866
        %v868 = vmul.f32 %v867, %v416
        %870 = vrot.lane.b32.xlu0 %v868, 48
        %v871 = vpop.permute.xlu0 %870
        %v872 = vrot.slane %v871, 7
        %v873 = vsel %vm446, %v872, %v871
        %v875 = vadd.f32 %v865, %v873
        %s876 = sld [smem:[#allocation5 + $0x57]]
        %v877 = vstv %s876
        %v878 = vmul.f32 %v877, %v417
        %880 = vrot.lane.b32.xlu0 %v878, 48
        %v881 = vpop.permute.xlu0 %880
        %v882 = vrot.slane %v881, 7
        %v883 = vsel %vm446, %v882, %v881
        %v885 = vadd.f32 %v875, %v883
        %s886 = sld [smem:[#allocation5 + $0x2d]]
        %v887 = vstv %s886
        %v888 = vmul.f32 %v887, %v416
        %890 = vrot.lane.b32.xlu0 %v888, 32
        %v891 = vpop.permute.xlu0 %890
        %v892 = vrot.slane %v891, 7
        %v893 = vsel %vm467, %v892, %v891
        %v895 = vadd.f32 %v885, %v893
        %s896 = sld [smem:[#allocation5 + $0x5e]]
        %v897 = vstv %s896
        %v898 = vmul.f32 %v897, %v417
        %900 = vrot.lane.b32.xlu0 %v898, 32
        %v901 = vpop.permute.xlu0 %900
        %v902 = vrot.slane %v901, 7
        %v903 = vsel %vm467, %v902, %v901
        %v905 = vadd.f32 %v895, %v903
        %907 = vrot.lane.b32.xlu0 %v905, 48
        %v908 = vpop.permute.xlu0 %907
        %v909 = vrot.slane %v908, 1
        %v910 = vsel %vm446, %v908, %v909
        %v912 = vadd.f32 %v775, %v910
        %s913 = sld [smem:[#allocation5 + $0x4]]
        %v914 = vstv %s913
        %v915 = vmul.f32 %v914, %v343
        %v916 = vadd.f32 %v915, 0.0
        %s917 = sld [smem:[#allocation5 + $0x35]]
        %v918 = vstv %s917
        %v919 = vmul.f32 %v918, %v344
        %v920 = vadd.f32 %v916, %v919
        %s921 = sld [smem:[#allocation5 + $0xb]]
        %v922 = vstv %s921
        %v923 = vmul.f32 %v922, %v343
        %925 = vrot.lane.b32.xlu0 %v923, 112
        %v926 = vpop.permute.xlu0 %925
        %v927 = vrot.slane %v926, 1
        %v928 = vsel %vm360, %v926, %v927
        %v930 = vadd.f32 %v920, %v928
        %s931 = sld [smem:[#allocation5 + $0x3c]]
        %v932 = vstv %s931
        %v933 = vmul.f32 %v932, %v344
        %935 = vrot.lane.b32.xlu0 %v933, 112
        %v936 = vpop.permute.xlu0 %935
        %v937 = vrot.slane %v936, 1
        %v938 = vsel %vm360, %v936, %v937
        %v940 = vadd.f32 %v930, %v938
        %s941 = sld [smem:[#allocation5 + $0x12]]
        %v942 = vstv %s941
        %v943 = vmul.f32 %v942, %v343
        %945 = vrot.lane.b32.xlu0 %v943, 96
        %v946 = vpop.permute.xlu0 %945
        %v947 = vrot.slane %v946, 1
        %v948 = vsel %vm381, %v946, %v947
        %v950 = vadd.f32 %v940, %v948
        %s951 = sld [smem:[#allocation5 + $0x43]]
        %v952 = vstv %s951
        %v953 = vmul.f32 %v952, %v344
        %955 = vrot.lane.b32.xlu0 %v953, 96
        %v956 = vpop.permute.xlu0 %955
        %v957 = vrot.slane %v956, 1
        %v958 = vsel %vm381, %v956, %v957
        %v960 = vadd.f32 %v950, %v958
        %s961 = sld [smem:[#allocation5 + $0x19]]
        %v962 = vstv %s961
        %v963 = vmul.f32 %v962, %v416
        %965 = vrot.lane.b32.xlu0 %v963, 80
        %v966 = vpop.permute.xlu0 %965
        %v967 = vrot.slane %v966, 7
        %v968 = vsel %vm402, %v967, %v966
        %v970 = vadd.f32 %v960, %v968
        %s971 = sld [smem:[#allocation5 + $0x4a]]
        %v972 = vstv %s971
        %v973 = vmul.f32 %v972, %v417
        %975 = vrot.lane.b32.xlu0 %v973, 80
        %v976 = vpop.permute.xlu0 %975
        %v977 = vrot.slane %v976, 7
        %v978 = vsel %vm402, %v977, %v976
        %v980 = vadd.f32 %v970, %v978
        %s981 = sld [smem:[#allocation5 + $0x20]]
        %v982 = vstv %s981
        %v983 = vmul.f32 %v982, %v416
        %985 = vrot.lane.b32.xlu0 %v983, 64
        %v986 = vpop.permute.xlu0 %985
        %v987 = vrot.slane %v986, 7
        %v988 = vsel %vm425, %v987, %v986
        %v990 = vadd.f32 %v980, %v988
        %s991 = sld [smem:[#allocation5 + $0x51]]
        %v992 = vstv %s991
        %v993 = vmul.f32 %v992, %v417
        %995 = vrot.lane.b32.xlu0 %v993, 64
        %v996 = vpop.permute.xlu0 %995
        %v997 = vrot.slane %v996, 7
        %v998 = vsel %vm425, %v997, %v996
        %v1000 = vadd.f32 %v990, %v998
        %s1001 = sld [smem:[#allocation5 + $0x27]]
        %v1002 = vstv %s1001
        %v1003 = vmul.f32 %v1002, %v416
        %1005 = vrot.lane.b32.xlu0 %v1003, 48
        %v1006 = vpop.permute.xlu0 %1005
        %v1007 = vrot.slane %v1006, 7
        %v1008 = vsel %vm446, %v1007, %v1006
        %v1010 = vadd.f32 %v1000, %v1008
        %s1011 = sld [smem:[#allocation5 + $0x58]]
        %v1012 = vstv %s1011
        %v1013 = vmul.f32 %v1012, %v417
        %1015 = vrot.lane.b32.xlu0 %v1013, 48
        %v1016 = vpop.permute.xlu0 %1015
        %v1017 = vrot.slane %v1016, 7
        %v1018 = vsel %vm446, %v1017, %v1016
        %v1020 = vadd.f32 %v1010, %v1018
        %s1021 = sld [smem:[#allocation5 + $0x2e]]
        %v1022 = vstv %s1021
        %v1023 = vmul.f32 %v1022, %v416
        %1025 = vrot.lane.b32.xlu0 %v1023, 32
        %v1026 = vpop.permute.xlu0 %1025
        %v1027 = vrot.slane %v1026, 7
        %v1028 = vsel %vm467, %v1027, %v1026
        %v1030 = vadd.f32 %v1020, %v1028
        %s1031 = sld [smem:[#allocation5 + $0x5f]]
        %v1032 = vstv %s1031
        %v1033 = vmul.f32 %v1032, %v417
        %1035 = vrot.lane.b32.xlu0 %v1033, 32
        %v1036 = vpop.permute.xlu0 %1035
        %v1037 = vrot.slane %v1036, 7
        %v1038 = vsel %vm467, %v1037, %v1036
        %v1040 = vadd.f32 %v1030, %v1038
        %v1041 = vadd.s32 %v339, 1
        %vm1042 = vcmp.ge.s32.totalorder %v1041, 0
        %vm1043 = vcmp.lt.s32.totalorder %v1041, 16
        %vm1044 = vmand %vm1042, %vm1043
        %1046 = vrot.lane.b32.xlu0 %v1040, 47
        %v1047 = vpop.permute.xlu0 %1046
        %v1048 = vrot.slane %v1047, 1
        %vm1049 = vcmask 384000
        %v1050 = vsel %vm1049, %v1047, %v1048
        %v1052 = vsel %vm1044, %v1050, 0.0
        %v1053 = vadd.f32 %v912, %v1052
        %s1054 = sld [smem:[#allocation5 + $0x5]]
        %v1055 = vstv %s1054
        %v1056 = vmul.f32 %v1055, %v343
        %v1057 = vadd.f32 %v1056, 0.0
        %s1058 = sld [smem:[#allocation5 + $0x36]]
        %v1059 = vstv %s1058
        %v1060 = vmul.f32 %v1059, %v344
        %v1061 = vadd.f32 %v1057, %v1060
        %s1062 = sld [smem:[#allocation5 + $0xc]]
        %v1063 = vstv %s1062
        %v1064 = vmul.f32 %v1063, %v343
        %1066 = vrot.lane.b32.xlu0 %v1064, 112
        %v1067 = vpop.permute.xlu0 %1066
        %v1068 = vrot.slane %v1067, 1
        %v1069 = vsel %vm360, %v1067, %v1068
        %v1071 = vadd.f32 %v1061, %v1069
        %s1072 = sld [smem:[#allocation5 + $0x3d]]
        %v1073 = vstv %s1072
        %v1074 = vmul.f32 %v1073, %v344
        %1076 = vrot.lane.b32.xlu0 %v1074, 112
        %v1077 = vpop.permute.xlu0 %1076
        %v1078 = vrot.slane %v1077, 1
        %v1079 = vsel %vm360, %v1077, %v1078
        %v1081 = vadd.f32 %v1071, %v1079
        %s1082 = sld [smem:[#allocation5 + $0x13]]
        %v1083 = vstv %s1082
        %v1084 = vmul.f32 %v1083, %v343
        %1086 = vrot.lane.b32.xlu0 %v1084, 96
        %v1087 = vpop.permute.xlu0 %1086
        %v1088 = vrot.slane %v1087, 1
        %v1089 = vsel %vm381, %v1087, %v1088
        %v1091 = vadd.f32 %v1081, %v1089
        %s1092 = sld [smem:[#allocation5 + $0x44]]
        %v1093 = vstv %s1092
        %v1094 = vmul.f32 %v1093, %v344
        %1096 = vrot.lane.b32.xlu0 %v1094, 96
        %v1097 = vpop.permute.xlu0 %1096
        %v1098 = vrot.slane %v1097, 1
        %v1099 = vsel %vm381, %v1097, %v1098
        %v1101 = vadd.f32 %v1091, %v1099
        %s1102 = sld [smem:[#allocation5 + $0x1a]]
        %v1103 = vstv %s1102
        %v1104 = vmul.f32 %v1103, %v416
        %1106 = vrot.lane.b32.xlu0 %v1104, 80
        %v1107 = vpop.permute.xlu0 %1106
        %v1108 = vrot.slane %v1107, 7
        %v1109 = vsel %vm402, %v1108, %v1107
        %v1111 = vadd.f32 %v1101, %v1109
        %s1112 = sld [smem:[#allocation5 + $0x4b]]
        %v1113 = vstv %s1112
        %v1114 = vmul.f32 %v1113, %v417
        %1116 = vrot.lane.b32.xlu0 %v1114, 80
        %v1117 = vpop.permute.xlu0 %1116
        %v1118 = vrot.slane %v1117, 7
        %v1119 = vsel %vm402, %v1118, %v1117
        %v1121 = vadd.f32 %v1111, %v1119
        %s1122 = sld [smem:[#allocation5 + $0x21]]
        %v1123 = vstv %s1122
        %v1124 = vmul.f32 %v1123, %v416
        %1126 = vrot.lane.b32.xlu0 %v1124, 64
        %v1127 = vpop.permute.xlu0 %1126
        %v1128 = vrot.slane %v1127, 7
        %v1129 = vsel %vm425, %v1128, %v1127
        %v1131 = vadd.f32 %v1121, %v1129
        %s1132 = sld [smem:[#allocation5 + $0x52]]
        %v1133 = vstv %s1132
        %v1134 = vmul.f32 %v1133, %v417
        %1136 = vrot.lane.b32.xlu0 %v1134, 64
        %v1137 = vpop.permute.xlu0 %1136
        %v1138 = vrot.slane %v1137, 7
        %v1139 = vsel %vm425, %v1138, %v1137
        %v1141 = vadd.f32 %v1131, %v1139
        %s1142 = sld [smem:[#allocation5 + $0x28]]
        %v1143 = vstv %s1142
        %v1144 = vmul.f32 %v1143, %v416
        %1146 = vrot.lane.b32.xlu0 %v1144, 48
        %v1147 = vpop.permute.xlu0 %1146
        %v1148 = vrot.slane %v1147, 7
        %v1149 = vsel %vm446, %v1148, %v1147
        %v1151 = vadd.f32 %v1141, %v1149
        %s1152 = sld [smem:[#allocation5 + $0x59]]
        %v1153 = vstv %s1152
        %v1154 = vmul.f32 %v1153, %v417
        %1156 = vrot.lane.b32.xlu0 %v1154, 48
        %v1157 = vpop.permute.xlu0 %1156
        %v1158 = vrot.slane %v1157, 7
        %v1159 = vsel %vm446, %v1158, %v1157
        %v1161 = vadd.f32 %v1151, %v1159
        %s1162 = sld [smem:[#allocation5 + $0x2f]]
        %v1163 = vstv %s1162
        %v1164 = vmul.f32 %v1163, %v416
        %1166 = vrot.lane.b32.xlu0 %v1164, 32
        %v1167 = vpop.permute.xlu0 %1166
        %v1168 = vrot.slane %v1167, 7
        %v1169 = vsel %vm467, %v1168, %v1167
        %v1171 = vadd.f32 %v1161, %v1169
        %s1172 = sld [smem:[#allocation5 + $0x60]]
        %v1173 = vstv %s1172
        %v1174 = vmul.f32 %v1173, %v417
        %1176 = vrot.lane.b32.xlu0 %v1174, 32
        %v1177 = vpop.permute.xlu0 %1176
        %v1178 = vrot.slane %v1177, 7
        %v1179 = vsel %vm467, %v1178, %v1177
        %v1181 = vadd.f32 %v1171, %v1179
        %v1182 = vadd.s32 %v339, 2
        %vm1183 = vcmp.ge.s32.totalorder %v1182, 0
        %vm1184 = vcmp.lt.s32.totalorder %v1182, 16
        %vm1185 = vmand %vm1183, %vm1184
        %1187 = vrot.lane.b32.xlu0 %v1181, 46
        %v1188 = vpop.permute.xlu0 %1187
        %v1189 = vrot.slane %v1188, 1
        %vm1190 = vcmask 375808
        %v1191 = vsel %vm1190, %v1188, %v1189
        %v1193 = vsel %vm1185, %v1191, 0.0
        %v1194 = vadd.f32 %v1053, %v1193
        %s1195 = sld [smem:[#allocation5 + $0x6]]
        %v1196 = vstv %s1195
        %v1197 = vmul.f32 %v1196, %v343
        %v1198 = vadd.f32 %v1197, 0.0
        %s1199 = sld [smem:[#allocation5 + $0x37]]
        %v1200 = vstv %s1199
        %v1201 = vmul.f32 %v1200, %v344
        %v1202 = vadd.f32 %v1198, %v1201
        %s1203 = sld [smem:[#allocation5 + $0xd]]
        %v1204 = vstv %s1203
        %v1205 = vmul.f32 %v1204, %v343
        %1207 = vrot.lane.b32.xlu0 %v1205, 112
        %v1208 = vpop.permute.xlu0 %1207
        %v1209 = vrot.slane %v1208, 1
        %v1210 = vsel %vm360, %v1208, %v1209
        %v1212 = vadd.f32 %v1202, %v1210
        %s1213 = sld [smem:[#allocation5 + $0x3e]]
        %v1214 = vstv %s1213
        %v1215 = vmul.f32 %v1214, %v344
        %1217 = vrot.lane.b32.xlu0 %v1215, 112
        %v1218 = vpop.permute.xlu0 %1217
        %v1219 = vrot.slane %v1218, 1
        %v1220 = vsel %vm360, %v1218, %v1219
        %v1222 = vadd.f32 %v1212, %v1220
        %s1223 = sld [smem:[#allocation5 + $0x14]]
        %v1224 = vstv %s1223
        %v1225 = vmul.f32 %v1224, %v343
        %1227 = vrot.lane.b32.xlu0 %v1225, 96
        %v1228 = vpop.permute.xlu0 %1227
        %v1229 = vrot.slane %v1228, 1
        %v1230 = vsel %vm381, %v1228, %v1229
        %v1232 = vadd.f32 %v1222, %v1230
        %s1233 = sld [smem:[#allocation5 + $0x45]]
        %v1234 = vstv %s1233
        %v1235 = vmul.f32 %v1234, %v344
        %1237 = vrot.lane.b32.xlu0 %v1235, 96
        %v1238 = vpop.permute.xlu0 %1237
        %v1239 = vrot.slane %v1238, 1
        %v1240 = vsel %vm381, %v1238, %v1239
        %v1242 = vadd.f32 %v1232, %v1240
        %s1243 = sld [smem:[#allocation5 + $0x1b]]
        %v1244 = vstv %s1243
        %v1245 = vmul.f32 %v1244, %v416
        %1247 = vrot.lane.b32.xlu0 %v1245, 80
        %v1248 = vpop.permute.xlu0 %1247
        %v1249 = vrot.slane %v1248, 7
        %v1250 = vsel %vm402, %v1249, %v1248
        %v1252 = vadd.f32 %v1242, %v1250
        %s1253 = sld [smem:[#allocation5 + $0x4c]]
        %v1254 = vstv %s1253
        %v1255 = vmul.f32 %v1254, %v417
        %1257 = vrot.lane.b32.xlu0 %v1255, 80
        %v1258 = vpop.permute.xlu0 %1257
        %v1259 = vrot.slane %v1258, 7
        %v1260 = vsel %vm402, %v1259, %v1258
        %v1262 = vadd.f32 %v1252, %v1260
        %s1263 = sld [smem:[#allocation5 + $0x22]]
        %v1264 = vstv %s1263
        %v1265 = vmul.f32 %v1264, %v416
        %1267 = vrot.lane.b32.xlu0 %v1265, 64
        %v1268 = vpop.permute.xlu0 %1267
        %v1269 = vrot.slane %v1268, 7
        %v1270 = vsel %vm425, %v1269, %v1268
        %v1272 = vadd.f32 %v1262, %v1270
        %s1273 = sld [smem:[#allocation5 + $0x53]]
        %v1274 = vstv %s1273
        %v1275 = vmul.f32 %v1274, %v417
        %1277 = vrot.lane.b32.xlu0 %v1275, 64
        %v1278 = vpop.permute.xlu0 %1277
        %v1279 = vrot.slane %v1278, 7
        %v1280 = vsel %vm425, %v1279, %v1278
        %v1282 = vadd.f32 %v1272, %v1280
        %s1283 = sld [smem:[#allocation5 + $0x29]]
        %v1284 = vstv %s1283
        %v1285 = vmul.f32 %v1284, %v416
        %1287 = vrot.lane.b32.xlu0 %v1285, 48
        %v1288 = vpop.permute.xlu0 %1287
        %v1289 = vrot.slane %v1288, 7
        %v1290 = vsel %vm446, %v1289, %v1288
        %v1292 = vadd.f32 %v1282, %v1290
        %s1293 = sld [smem:[#allocation5 + $0x5a]]
        %v1294 = vstv %s1293
        %v1295 = vmul.f32 %v1294, %v417
        %1297 = vrot.lane.b32.xlu0 %v1295, 48
        %v1298 = vpop.permute.xlu0 %1297
        %v1299 = vrot.slane %v1298, 7
        %v1300 = vsel %vm446, %v1299, %v1298
        %v1302 = vadd.f32 %v1292, %v1300
        %s1303 = sld [smem:[#allocation5 + $0x30]]
        %v1304 = vstv %s1303
        %v1305 = vmul.f32 %v1304, %v416
        %1307 = vrot.lane.b32.xlu0 %v1305, 32
        %v1308 = vpop.permute.xlu0 %1307
        %v1309 = vrot.slane %v1308, 7
        %v1310 = vsel %vm467, %v1309, %v1308
        %v1312 = vadd.f32 %v1302, %v1310
        %s1313 = sld [smem:[#allocation5 + $0x61]]
        %v1314 = vstv %s1313
        %v1315 = vmul.f32 %v1314, %v417
        %1317 = vrot.lane.b32.xlu0 %v1315, 32
        %v1318 = vpop.permute.xlu0 %1317
        %v1319 = vrot.slane %v1318, 7
        %v1320 = vsel %vm467, %v1319, %v1318
        %v1322 = vadd.f32 %v1312, %v1320
        %v1323 = vadd.s32 %v339, 3
        %vm1324 = vcmp.ge.s32.totalorder %v1323, 0
        %vm1325 = vcmp.lt.s32.totalorder %v1323, 16
        %vm1326 = vmand %vm1324, %vm1325
        %1328 = vrot.lane.b32.xlu0 %v1322, 45
        %v1329 = vpop.permute.xlu0 %1328
        %v1330 = vrot.slane %v1329, 1
        %vm1331 = vcmask 367616
        %v1332 = vsel %vm1331, %v1329, %v1330
        %v1334 = vsel %vm1326, %v1332, 0.0
        %v1335 = vadd.f32 %v1194, %v1334
        %v1336 = vsub.f32 0.0, %v1335
        %v1337 = vmul.f32 %v1336, 1.442695
        %v1338 = vpow.pop %v1337
        %v1339 = vadd.f32 %v1338, 1.0
        %v1340 = vrcp.pop %v1339
        %v1341 = vmul.f32 1.0, %v1340
        %v1342 = vld [vmem:[%s205] sm:$0xff]
        %v1343 = vld [vmem:[%s205 + $0x8] sm:$0xff]
        %v1345 = vlaneseq
        %v1346 = vshrl.u32 %v1345, 7
        %v1347 = vsub.s32 0, %v1346
        %v1348 = vrot.slane %v1341, %v1347
        %v1349 = vlaneseq
        %v1350 = vshrl.u32 %v1349, 7
        %v1351 = vsub.s32 1, %v1350
        %v1352 = vrot.slane %v1341, %v1351
        %v1355 = vmul.f32 %v1342, %v1348
        %v1356 = vmul.f32 %v1343, %v1352
        %1357 = vst [vmem:[%s230] sm:$0xff] %v1355
        %1358 = vst [vmem:[%s230 + $0x8] sm:$0xff] %v1356
        %v1359 = vld [vmem:[%s205 + $0x10] sm:$0xff]
        %v1360 = vld [vmem:[%s205 + $0x18] sm:$0xff]
        %v1361 = vmul.f32 %v1359, %v1348
        %v1362 = vmul.f32 %v1360, %v1352
        %1363 = vst [vmem:[%s230 + $0x10] sm:$0xff] %v1361
        %1364 = vst [vmem:[%s230 + $0x18] sm:$0xff] %v1362
        %s1365 = sand.u32 %s120, 1
        %s1366 = scalar_lea.sflag [#allocation7], %s1365
        %s1367 = sand.u32 %s120, 1
        %s1368 = smul.addr %s1367, 32
        %s1369 = scalar_lea.vmem [#allocation10], %s1368
        // Predicated region
        $region45: #{tpu_custom_call.1} parent=35 // pred_check
          %p1370 = pneg %p130
        $region46: #{tpu_custom_call.1} parent=35 // pred_check_branch
          %1372 = sbr.rel (%p1370) target = $region48
        $region47: #{tpu_custom_call.1} parent=35 // pred_region
          %s1374 = ssub.s32 512, 512
          %1375 = vsyncadd %s1366, %s1374
          %s1376 = smul.addr %s23, 4
          %s1377 = smul.addr %s1376, 128
          %s1378 = scalar_lea.hbm %s4, %s1377
          %s1379 = sshll.u32 %s1369, 4
          %s1380 = int_to_ptr.vmem [resolvable:$true] %s1379
          %1385 = dma.vmem_to_hbm [thread:$0]  %s1380, 512, %s1378, %s1366, 256, 256, 16
        $region48: #{tpu_custom_call.1} parent=35 // pred_fallthru
          _
      $region36: #{tpu_custom_call.1} parent=5 // pred_fallthru
        _
      %p1386 = scmp.le.s32.totalorder 2, %s18
      // Predicated region
      $region49: #{tpu_custom_call.1} parent=5 // pred_check
        %p1387 = pneg %p1386
      $region50: #{tpu_custom_call.1} parent=5 // pred_check_branch
        %1389 = sbr.rel (%p1387) target = $region52
      $region51: #{tpu_custom_call.1} parent=5 // pred_region
        %s1390 = ssub.s32 %s18, 2
        // Predicated region
        $region53: #{tpu_custom_call.1} parent=51 // pred_check
          %p1391 = pneg %p136
        $region54: #{tpu_custom_call.1} parent=51 // pred_check_branch
          %1393 = sbr.rel (%p1391) target = $region56
        $region55: #{tpu_custom_call.1} parent=51 // pred_region
          %s1394 = sand.u32 %s121, 1
          %s1395 = scalar_lea.sflag [#allocation7], %s1394
          %s1396 = sand.u32 %s121, 1
          %s1397 = smul.addr %s1396, 32
          %s1398 = scalar_lea.vmem [#allocation10], %s1397
          %1399 = dma.done %s1395, 512
        $region56: #{tpu_custom_call.1} parent=51 // pred_fallthru
          _
      $region52: #{tpu_custom_call.1} parent=5 // pred_fallthru
        _
    $region6: #{tpu_custom_call.1} parent=1 // loop_footer
      %s22 = sadd.s32 1, %s18
    $region7: #{tpu_custom_call.1} parent=1 // loop_footer_branch
      %17 = sbr.rel target = $region3
    $region8: #{tpu_custom_call.1} parent=1 // loop_exit
      _
    %1400 = vsyncpa [#allocation6], 1
    %s1401 = scalar_lea.sflag [#allocation6], 1
    %1402 = vsyncpa %s1401, 1
    %1403 = vsyncpa [#allocation7], 1
    %s1404 = scalar_lea.sflag [#allocation7], 1
    %1405 = vsyncpa %s1404, 1
    %1406 = vsyncpa [#allocation8], 1
    %s1407 = scalar_lea.sflag [#allocation8], 1
    %1408 = vsyncpa %s1407, 1

</llo_original>
